<compile_context>
chip_gen: v6e
topology: v6e:2x2x1
jax: 0.10.0
libtpu: 0.0.40
codegen_flags: <defaults>
</compile_context>

<pallas_src>
import functools

import numpy as np

import jax
import jax.numpy as jnp
from jax.experimental import pallas as pl
from jax.experimental.pallas import tpu as pltpu

K = 7          # module-default kernel_size (must be 3 or 7)


# --------------------------------------------------------------------------- #
# Small helpers
# --------------------------------------------------------------------------- #
def _roll_lanes(v, shift):
    """Static circular roll along the last (lane) axis; no-op for shift == 0."""
    return v if shift == 0 else pltpu.roll(v, shift, axis=1)


def _split_f32_to_bf16(a, terms=3):
    """Split an f32 array into `terms` bf16 arrays whose f32 sum ~= a.

    Used for the explicit multi-pass (bf16x6-style) f32 matmul emulation on
    the MXU: 3 terms capture the full f32 mantissa.
    """
    parts = []
    rem = a.astype(jnp.float32)
    for _ in range(terms):
        p = rem.astype(jnp.bfloat16)
        parts.append(p)
        rem = rem - p.astype(jnp.float32)
    return parts


def _vmem_capacity_bytes():
    """Physical VMEM of the current generation (fallback: v7x's 64 MiB/core)."""
    try:
        cap = int(getattr(pltpu.get_tpu_info(), "vmem_capacity_bytes", 0))
        if cap > 0:
            return cap
    except Exception:
        pass
    return 64 << 20


# --------------------------------------------------------------------------- #
# Host-side precomputation (layout plumbing, done once per shape)
# --------------------------------------------------------------------------- #
def _build_conv_matrices(weight, H, W, ksize, pad):
    """(1,2,K,K) conv weight -> (2, 3, HW, HW) bf16 banded conv matrices.

    M[c][p_in, p_out] = w[c, dy+pad, dx+pad] for every valid tap, so
    acc = avg @ M[0] + max @ M[1] reproduces the zero-padded KxK conv exactly
    (border zeros are simply missing entries).  Each f32 matrix is split into
    3 bf16 terms for the exact multi-pass MXU matmul in the kernel.
    """
    HW = H * W
    ys, xs = np.divmod(np.arange(HW), W)
    rows, cols, taps = [], [], []
    for dy in range(-pad, pad + 1):
        for dx in range(-pad, pad + 1):
            valid = ((ys + dy >= 0) & (ys + dy < H)
                     & (xs + dx >= 0) & (xs + dx < W))
            p_out = np.nonzero(valid)[0]
            rows.append((ys[p_out] + dy) * W + (xs[p_out] + dx))
            cols.append(p_out)
            taps.append(np.full(p_out.shape,
                                (dy + pad) * ksize + (dx + pad), np.int32))
    rows = np.concatenate(rows)
    cols = np.concatenate(cols)
    taps = np.concatenate(taps)

    w2 = jnp.asarray(weight, jnp.float32).reshape(2, ksize * ksize)
    mats = []
    for c in range(2):                                    # 0: avg map, 1: max map
        m = jnp.zeros((HW, HW), jnp.float32).at[rows, cols].set(w2[c, taps])
        mats.append(jnp.stack(_split_f32_to_bf16(m, 3)))  # (3, HW, HW) bf16
    return jnp.stack(mats)                                # (2, 3, HW, HW) bf16


def _build_border_masks(H, W, pad):
    """Precomputed 0/1 border masks for the roll fallback: (2*(2*pad+1), HW).

    Rows [0, 2*pad]       : horizontal masks for dx = -pad..pad
    Rows [2*pad+1, 4*pad+1]: vertical   masks for dy = -pad..pad
    """
    HW = H * W
    p = np.arange(HW)
    xs = p % W
    rows = []
    for off in range(-pad, pad + 1):                      # horizontal (dx)
        lo, hi = max(0, -off), min(W, W - off)
        rows.append(((xs >= lo) & (xs < hi)).astype(np.float32))
    for off in range(-pad, pad + 1):                      # vertical (dy)
        lo, hi = max(0, -off) * W, min(H, H - off) * W
        rows.append(((p >= lo) & (p < hi)).astype(np.float32))
    return jnp.asarray(np.stack(rows))


# --------------------------------------------------------------------------- #
# Kernels
# --------------------------------------------------------------------------- #
def _reduce_channels(x_ref, sum_ref, max_ref):
    """Accumulate channel sum (f32) and running channel max across the C-chunk
    grid axis.  No whole-block f32 upcast is materialized."""
    k = pl.program_id(1)

    @pl.when(k == 0)
    def _():
        sum_ref[...] = jnp.zeros(sum_ref.shape, sum_ref.dtype)
        max_ref[...] = jnp.full(max_ref.shape, -jnp.inf, max_ref.dtype)

    x = x_ref[...]                                        # native dtype
    sum_ref[...] += jnp.sum(x, axis=1, dtype=jnp.float32)
    max_ref[...] = jnp.maximum(max_ref[...],
                               jnp.max(x, axis=1).astype(jnp.float32))


def _sa_kernel_mxu(wm_ref, x_ref, o_ref, sum_ref, max_ref, *, inv_c):
    # wm_ref : VMEM (2, 3, HW, HW) bf16 -- banded conv matrices (avg/max map),
    #          each split into 3 bf16 terms (exact f32 via multi-pass MXU).
    # x_ref  : VMEM (bt, ck, HW)      -- batch tile x channel chunk, lane-dense
    # o_ref  : VMEM (bt, 1, HW)
    # sum_ref/max_ref : VMEM (bt, HW) f32 accumulators across the C-chunk axis
    _reduce_channels(x_ref, sum_ref, max_ref)

    @pl.when(pl.program_id(1) == pl.num_programs(1) - 1)
    def _():
        maps = (sum_ref[...] * inv_c, max_ref[...])       # avg, max : (bt, HW)
        acc = jnp.zeros(sum_ref.shape, jnp.float32)
        for m, amap in enumerate(maps):
            a_parts = _split_f32_to_bf16(amap, 3)
            for i in range(3):
                for j in range(3 - i):                    # keep terms i + j <= 2
                    acc += jnp.dot(a_parts[i], wm_ref[m, j],
                                   preferred_element_type=jnp.float32)
        # sigmoid: exp on the EUP, single exact f32 divide
        o_ref[:, 0, :] = (1.0 / (1.0 + jnp.exp(-acc))).astype(o_ref.dtype)


def _sa_kernel_roll(w_ref, masks_ref, x_ref, o_ref, sum_ref, max_ref,
                    *, H, W, ksize, pad, inv_c):
    # Fallback for H*W too large for the banded conv matrices: KxK conv as
    # static lane rolls (XLU) + precomputed border masks, co-issued with the
    # VPU multiply-adds.  Masks come from the wrapper (not rebuilt per step).
    HW = H * W
    KK = ksize * ksize
    nmask = 2 * pad + 1
    _reduce_channels(x_ref, sum_ref, max_ref)

    @pl.when(pl.program_id(1) == pl.num_programs(1) - 1)
    def _():
        avg = sum_ref[...] * inv_c                        # (bt, HW) f32
        mx = max_ref[...]
        acc = jnp.zeros(avg.shape, jnp.float32)
        # TODO(synk): for very large bt*HW, run this tap loop over batch
        # sub-chunks in a lax.fori_loop to bound vreg live ranges (spills).
        for oy in range(-pad, pad + 1):
            row = None
            for ox in range(-pad, pad + 1):
                w_avg = w_ref[(oy + pad) * ksize + (ox + pad)]        # SMEM
                w_max = w_ref[KK + (oy + pad) * ksize + (ox + pad)]   # SMEM
                shift = (-(oy * W + ox)) % HW                         # static
                tap = (w_avg * _roll_lanes(avg, shift)
                       + w_max * _roll_lanes(mx, shift))
                if ox != 0:                               # horizontal border
                    tap = masks_ref[ox + pad:ox + pad + 1, :] * tap
                row = tap if row is None else row + tap
            if oy != 0:                                   # vertical border
                r0 = nmask + oy + pad
                row = masks_ref[r0:r0 + 1, :] * row
            acc = acc + row
        o_ref[:, 0, :] = (1.0 / (1.0 + jnp.exp(-acc))).astype(o_ref.dtype)


# --------------------------------------------------------------------------- #
# Block sizing
# --------------------------------------------------------------------------- #
def _pick_blocks(N, C, HW, in_item, out_item, aux_bytes, vmem_cap):
    """Choose (batch tile bt, channel chunk ck).

    Working set per grid step (inputs double-buffered by the Pallas pipeline):
      x block      : 2 * bt * ck * HW * in_item
      f32 reduce   :     bt * ck * HW * 4          (worst-case upcast temp)
      out block    : 2 * bt * HW * out_item
      accumulators : 2 * bt * HW * 4
      conv temps   : ~8 * bt * HW * 4
      aux          : conv matrices / border masks  (aux_bytes)
    Budget ~45% of this generation's physical VMEM (v5e/v6e 128 MiB,
    v7x 64 MiB) so everything fits comfortably under the scoped limit.
    """
    budget = max(int(0.45 * vmem_cap) - aux_bytes, 1 << 20)

    def ws(bt, ck):
        return (2 * bt * ck * HW * in_item + bt * ck * HW * 4
                + 2 * bt * HW * out_item + 10 * bt * HW * 4)

    # ck must divide C and (for the (8,128) rule on the block's second-to-last
    # dim) be a multiple of 8, or be C itself.
    ck_cands = sorted({c for c in range(8, C, 8) if C % c == 0} | {C},
                      reverse=True)
    bt_cands = [b for b in range(N, 0, -1) if N % b == 0]

    for ck in ck_cands:                      # prefer unchunked channels
        for bt in bt_cands:                  # then the biggest batch tile
            if ws(bt, ck) > budget:
                continue
            # Megacore (v7x): keep >=2 steps on the "parallel" batch axis, but
            # only when that does not shrink the streaming block below ~2 MiB
            # (measured no-op on single-TC v5e/v6e, so harmless there).
            if N // bt < 2:
                for bt2 in bt_cands:
                    if (bt2 <= N // 2 and ws(bt2, ck) <= budget
                            and bt2 * ck * HW * in_item >= (2 << 20)):
                        bt = bt2
                        break
            return bt, ck
    return 1, ck_cands[-1]


# --------------------------------------------------------------------------- #
# Wrapper
# --------------------------------------------------------------------------- #
def spatial_attention(x, weight, *, block_batch=None, channel_chunk=None,
                      conv_path="auto"):
    """x: (N, C, H, W); weight: (1, 2, K, K)  ->  (N, 1, H, W) attention map."""
    N, C, H, W = x.shape
    HW = H * W
    ksize = weight.shape[-1]
    pad = 3 if ksize == 7 else 1

    x_flat = x.reshape(N, C, HW)                 # lane-dense layout plumbing
    in_item = x.dtype.itemsize
    out_item = x.dtype.itemsize

    vmem_cap = _vmem_capacity_bytes()
    # MXU conv path resident bytes: 2 maps x 3 bf16 split terms of (HW, HW).
    wmat_bytes = 2 * 3 * HW * HW * 2
    if conv_path == "auto":
        use_mxu = wmat_bytes <= min(12 << 20, vmem_cap // 5)
    else:
        use_mxu = conv_path == "mxu"
    aux_bytes = 2 * (wmat_bytes if use_mxu else 2 * (2 * pad + 1) * HW * 4)

    bt, ck = _pick_blocks(N, C, HW, in_item, out_item, aux_bytes, vmem_cap)
    if block_batch is not None:
        bt = block_batch
    if channel_chunk is not None:
        ck = channel_chunk
    assert N % bt == 0 and C % ck == 0, (bt, ck)

    grid = (N // bt, C // ck)
    out_shape = jax.ShapeDtypeStruct((N, 1, HW), x.dtype)
    x_spec = pl.BlockSpec((bt, ck, HW), lambda n, k: (n, k, 0))
    o_spec = pl.BlockSpec((bt, 1, HW), lambda n, k: (n, 0, 0))
    scratch = [pltpu.VMEM((bt, HW), jnp.float32),     # channel-sum accumulator
               pltpu.VMEM((bt, HW), jnp.float32)]     # running channel max

    compiler_params = pltpu.CompilerParams(
        # batch tiles independent ("parallel", v7x megacore-shardable); the
        # channel-chunk reduction axis must stay sequential ("arbitrary").
        dimension_semantics=("parallel", "arbitrary"),
        # Raise the scoped-VMEM limit (v5e default is only 16 MiB) but stay
        # below this generation's physical capacity.
        vmem_limit_bytes=int(0.9 * vmem_cap),
    )
    cost = pl.CostEstimate(
        flops=int(N * HW * (2 * C + 4 * ksize * ksize)),
        transcendentals=int(N * HW),
        bytes_accessed=int(N * C * HW * in_item + N * HW * out_item
                           + aux_bytes // 2),
    )

    if use_mxu:
        wmats = _build_conv_matrices(weight, H, W, ksize, pad)
        out_flat = pl.pallas_call(
            functools.partial(_sa_kernel_mxu, inv_c=1.0 / C),
            out_shape=out_shape,
            grid=grid,
            in_specs=[
                pl.BlockSpec((2, 3, HW, HW), lambda n, k: (0, 0, 0, 0)),
                x_spec,
            ],
            out_specs=o_spec,
            scratch_shapes=scratch,
            compiler_params=compiler_params,
            cost_estimate=cost,
        )(wmats, x_flat)
    else:
        w_flat = weight.reshape(-1).astype(jnp.float32)       # (2*K*K,) SMEM
        masks = _build_border_masks(H, W, pad)                # (2*(2p+1), HW)
        out_flat = pl.pallas_call(
            functools.partial(_sa_kernel_roll, H=H, W=W, ksize=ksize,
                              pad=pad, inv_c=1.0 / C),
            out_shape=out_shape,
            grid=grid,
            in_specs=[
                pl.BlockSpec(memory_space=pltpu.MemorySpace.SMEM),
                pl.BlockSpec((2 * (2 * pad + 1), HW), lambda n, k: (0, 0)),
                x_spec,
            ],
            out_specs=o_spec,
            scratch_shapes=scratch,
            compiler_params=compiler_params,
            cost_estimate=cost,
        )(w_flat, masks, x_flat)

    return out_flat.reshape(N, 1, H, W)


# --------------------------------------------------------------------------- #
# Reference + self-test
# --------------------------------------------------------------------------- #
def _reference(x, weight):
    ksize = weight.shape[-1]
    pad = 3 if ksize == 7 else 1
    avg = jnp.mean(x, axis=1, keepdims=True)
    mx = jnp.max(x, axis=1, keepdims=True)
    cat = jnp.concatenate([avg, mx], axis=1)
    y = jax.lax.conv_general_dilated(
        cat, weight, window_strides=(1, 1), padding=((pad, pad), (pad, pad)),
        dimension_numbers=("NCHW", "OIHW", "NCHW"))
    return jax.nn.sigmoid(y)


if __name__ == "__main__":
    key = jax.random.PRNGKey(0)
    kx, kw = jax.random.split(key)

    N, C, H, W = 2, 4, 16, 16
    x = jax.random.normal(kx, (N, C, H, W), dtype=jnp.float32)
    # deterministic synthetic init for conv1 weight: shape (out=1, in=2, K, K)
    weight = 0.1 * jax.random.normal(kw, (1, 2, K, K), dtype=jnp.float32)

    ref = _reference(x, weight)

    # Main path (MXU banded-matrix conv for this HW).
    out = spatial_attention(x, weight)
    out = jax.block_until_ready(out)
    assert out.shape == (N, 1, H, W)
    assert jnp.allclose(out, ref, atol=1e-5, rtol=1e-5)

    # Fallback path (XLU roll + precomputed border masks) sanity check.
    out_roll = spatial_attention(x, weight, conv_path="roll")
    out_roll = jax.block_until_ready(out_roll)
    assert jnp.allclose(out_roll, ref, atol=1e-5, rtol=1e-5)

    print("KERNEL_OK")
</pallas_src>

<mosaic_0001>
module attributes {stable_mosaic.version = 11 : i64} {
  func.func @_sa_kernel_mxu(%arg0: i32, %arg1: i32, %arg2: memref<2x3x256x256xbf16, #tpu.memory_space<vmem>>, %arg3: memref<2x4x256xf32, #tpu.memory_space<vmem>>, %arg4: memref<2x1x256xf32, #tpu.memory_space<vmem>>, %arg5: memref<2x256xf32, #tpu.memory_space<vmem>>, %arg6: memref<2x256xf32, #tpu.memory_space<vmem>>) attributes {dimension_semantics = [#tpu.dimension_semantics<parallel>, #tpu.dimension_semantics<arbitrary>], iteration_bounds = array<i64: 1, 1>, scalar_prefetch = 0 : i64, scratch_operands = 2 : i64, tpu.core_type = #tpu.core_type<tc>, window_params = [{pipeline_mode = #tpu.pipeline_mode<synchronous>, transform_indices = @transform_0, window_bounds = array<i64: 2, 3, 256, 256>}, {transform_indices = @transform_1, window_bounds = array<i64: 2, 4, 256>}, {transform_indices = @transform_2, window_bounds = array<i64: 2, 1, 256>}]} {
    %c0_i32 = arith.constant 0 : i32
    %0 = arith.cmpi eq, %arg1, %c0_i32 : i32
    %1 = arith.extui %0 : i1 to i32
    %c0_i32_0 = arith.constant 0 : i32
    %2 = arith.cmpi ne, %1, %c0_i32_0 : i32
    scf.if %2 {
      %cst_14 = arith.constant 0.000000e+00 : f32
      %15 = vector.broadcast %cst_14 : f32 to vector<2x256xf32>
      %c0_15 = arith.constant 0 : index
      %c0_16 = arith.constant 0 : index
      %16 = vector.load %arg5[%c0_15, %c0_16] : memref<2x256xf32, #tpu.memory_space<vmem>>, vector<2x256xf32>
      tpu.vector_store %arg5[%c0_15, %c0_16], %15 {strides = array<i32>} : memref<2x256xf32, #tpu.memory_space<vmem>>, vector<2x256xf32>,
      %cst_17 = arith.constant 0xFF800000 : f32
      %17 = vector.broadcast %cst_17 : f32 to vector<2x256xf32>
      %c0_18 = arith.constant 0 : index
      %c0_19 = arith.constant 0 : index
      %18 = vector.load %arg6[%c0_18, %c0_19] : memref<2x256xf32, #tpu.memory_space<vmem>>, vector<2x256xf32>
      tpu.vector_store %arg6[%c0_18, %c0_19], %17 {strides = array<i32>} : memref<2x256xf32, #tpu.memory_space<vmem>>, vector<2x256xf32>,
    } else {
    }
    %c0 = arith.constant 0 : index
    %c0_1 = arith.constant 0 : index
    %c0_2 = arith.constant 0 : index
    %3 = vector.load %arg3[%c0, %c0_1, %c0_2] : memref<2x4x256xf32, #tpu.memory_space<vmem>>, vector<2x4x256xf32>
    %c0_3 = arith.constant 0 : index
    %c0_4 = arith.constant 0 : index
    %4 = vector.load %arg5[%c0_3, %c0_4] : memref<2x256xf32, #tpu.memory_space<vmem>>, vector<2x256xf32>
    %cst = arith.constant dense<0.000000e+00> : vector<2x256xf32>
    %5 = vector.multi_reduction <add>, %3, %cst [1] : vector<2x4x256xf32> to vector<2x256xf32>
    %6 = arith.addf %4, %5 : vector<2x256xf32>
    %c0_5 = arith.constant 0 : index
    %c0_6 = arith.constant 0 : index
    %7 = vector.load %arg5[%c0_5, %c0_6] : memref<2x256xf32, #tpu.memory_space<vmem>>, vector<2x256xf32>
    tpu.vector_store %arg5[%c0_5, %c0_6], %6 {strides = array<i32>} : memref<2x256xf32, #tpu.memory_space<vmem>>, vector<2x256xf32>,
    %c0_7 = arith.constant 0 : index
    %c0_8 = arith.constant 0 : index
    %8 = vector.load %arg6[%c0_7, %c0_8] : memref<2x256xf32, #tpu.memory_space<vmem>>, vector<2x256xf32>
    %cst_9 = arith.constant dense<0xFF800000> : vector<2x256xf32>
    %9 = vector.multi_reduction <maximumf>, %3, %cst_9 [1] : vector<2x4x256xf32> to vector<2x256xf32>
    %10 = arith.maximumf %8, %9 : vector<2x256xf32>
    %c0_10 = arith.constant 0 : index
    %c0_11 = arith.constant 0 : index
    %11 = vector.load %arg6[%c0_10, %c0_11] : memref<2x256xf32, #tpu.memory_space<vmem>>, vector<2x256xf32>
    tpu.vector_store %arg6[%c0_10, %c0_11], %10 {strides = array<i32>} : memref<2x256xf32, #tpu.memory_space<vmem>>, vector<2x256xf32>,
    %c0_i32_12 = arith.constant 0 : i32
    %12 = arith.cmpi eq, %arg1, %c0_i32_12 : i32
    %13 = arith.extui %12 : i1 to i32
    %c0_i32_13 = arith.constant 0 : i32
    %14 = arith.cmpi ne, %13, %c0_i32_13 : i32
    scf.if %14 {
      %c0_14 = arith.constant 0 : index
      %c0_15 = arith.constant 0 : index
      %15 = vector.load %arg5[%c0_14, %c0_15] : memref<2x256xf32, #tpu.memory_space<vmem>>, vector<2x256xf32>
      %cst_16 = arith.constant 2.500000e-01 : f32
      %16 = vector.broadcast %cst_16 : f32 to vector<2x256xf32>
      %17 = arith.mulf %15, %16 : vector<2x256xf32>
      %c0_17 = arith.constant 0 : index
      %c0_18 = arith.constant 0 : index
      %18 = vector.load %arg6[%c0_17, %c0_18] : memref<2x256xf32, #tpu.memory_space<vmem>>, vector<2x256xf32>
      %cst_19 = arith.constant 0.000000e+00 : f32
      %19 = vector.broadcast %cst_19 : f32 to vector<2x256xf32>
      %20 = arith.truncf %17 : vector<2x256xf32> to vector<2x256xbf16>
      %21 = arith.extf %20 : vector<2x256xbf16> to vector<2x256xf32>
      %22 = arith.subf %17, %21 : vector<2x256xf32>
      %23 = arith.truncf %22 : vector<2x256xf32> to vector<2x256xbf16>
      %24 = arith.extf %23 : vector<2x256xbf16> to vector<2x256xf32>
      %25 = arith.subf %22, %24 : vector<2x256xf32>
      %26 = arith.truncf %25 : vector<2x256xf32> to vector<2x256xbf16>
      %c0_20 = arith.constant 0 : index
      %c0_21 = arith.constant 0 : index
      %c0_22 = arith.constant 0 : index
      %c0_23 = arith.constant 0 : index
      %27 = vector.load %arg2[%c0_20, %c0_21, %c0_22, %c0_23] : memref<2x3x256x256xbf16, #tpu.memory_space<vmem>>, vector<1x1x256x256xbf16>
      %28 = vector.shape_cast %27 : vector<1x1x256x256xbf16> to vector<256x256xbf16>
      %cst_24 = arith.constant dense<0.000000e+00> : vector<2x256xf32>
      %29 = tpu.matmul %20, %28, %cst_24 {dimension_numbers = #tpu.dot_dimension_numbers<[1], [0], [0], [1], [0, 0, 1, 1], [], []>} : vector<2x256xbf16>, vector<256x256xbf16>, vector<2x256xf32> -> vector<2x256xf32>
      %30 = arith.addf %19, %29 : vector<2x256xf32>
      %c0_25 = arith.constant 0 : index
      %c1 = arith.constant 1 : index
      %c0_26 = arith.constant 0 : index
      %c0_27 = arith.constant 0 : index
      %31 = vector.load %arg2[%c0_25, %c1, %c0_26, %c0_27] : memref<2x3x256x256xbf16, #tpu.memory_space<vmem>>, vector<1x1x256x256xbf16>
      %32 = vector.shape_cast %31 : vector<1x1x256x256xbf16> to vector<256x256xbf16>
      %cst_28 = arith.constant dense<0.000000e+00> : vector<2x256xf32>
      %33 = tpu.matmul %20, %32, %cst_28 {dimension_numbers = #tpu.dot_dimension_numbers<[1], [0], [0], [1], [0, 0, 1, 1], [], []>} : vector<2x256xbf16>, vector<256x256xbf16>, vector<2x256xf32> -> vector<2x256xf32>
      %34 = arith.addf %30, %33 : vector<2x256xf32>
      %c0_29 = arith.constant 0 : index
      %c2 = arith.constant 2 : index
      %c0_30 = arith.constant 0 : index
      %c0_31 = arith.constant 0 : index
      %35 = vector.load %arg2[%c0_29, %c2, %c0_30, %c0_31] : memref<2x3x256x256xbf16, #tpu.memory_space<vmem>>, vector<1x1x256x256xbf16>
      %36 = vector.shape_cast %35 : vector<1x1x256x256xbf16> to vector<256x256xbf16>
      %cst_32 = arith.constant dense<0.000000e+00> : vector<2x256xf32>
      %37 = tpu.matmul %20, %36, %cst_32 {dimension_numbers = #tpu.dot_dimension_numbers<[1], [0], [0], [1], [0, 0, 1, 1], [], []>} : vector<2x256xbf16>, vector<256x256xbf16>, vector<2x256xf32> -> vector<2x256xf32>
      %38 = arith.addf %34, %37 : vector<2x256xf32>
      %c0_33 = arith.constant 0 : index
      %c0_34 = arith.constant 0 : index
      %c0_35 = arith.constant 0 : index
      %c0_36 = arith.constant 0 : index
      %39 = vector.load %arg2[%c0_33, %c0_34, %c0_35, %c0_36] : memref<2x3x256x256xbf16, #tpu.memory_space<vmem>>, vector<1x1x256x256xbf16>
      %40 = vector.shape_cast %39 : vector<1x1x256x256xbf16> to vector<256x256xbf16>
      %cst_37 = arith.constant dense<0.000000e+00> : vector<2x256xf32>
      %41 = tpu.matmul %23, %40, %cst_37 {dimension_numbers = #tpu.dot_dimension_numbers<[1], [0], [0], [1], [0, 0, 1, 1], [], []>} : vector<2x256xbf16>, vector<256x256xbf16>, vector<2x256xf32> -> vector<2x256xf32>
      %42 = arith.addf %38, %41 : vector<2x256xf32>
      %c0_38 = arith.constant 0 : index
      %c1_39 = arith.constant 1 : index
      %c0_40 = arith.constant 0 : index
      %c0_41 = arith.constant 0 : index
      %43 = vector.load %arg2[%c0_38, %c1_39, %c0_40, %c0_41] : memref<2x3x256x256xbf16, #tpu.memory_space<vmem>>, vector<1x1x256x256xbf16>
      %44 = vector.shape_cast %43 : vector<1x1x256x256xbf16> to vector<256x256xbf16>
      %cst_42 = arith.constant dense<0.000000e+00> : vector<2x256xf32>
      %45 = tpu.matmul %23, %44, %cst_42 {dimension_numbers = #tpu.dot_dimension_numbers<[1], [0], [0], [1], [0, 0, 1, 1], [], []>} : vector<2x256xbf16>, vector<256x256xbf16>, vector<2x256xf32> -> vector<2x256xf32>
      %46 = arith.addf %42, %45 : vector<2x256xf32>
      %c0_43 = arith.constant 0 : index
      %c0_44 = arith.constant 0 : index
      %c0_45 = arith.constant 0 : index
      %c0_46 = arith.constant 0 : index
      %47 = vector.load %arg2[%c0_43, %c0_44, %c0_45, %c0_46] : memref<2x3x256x256xbf16, #tpu.memory_space<vmem>>, vector<1x1x256x256xbf16>
      %48 = vector.shape_cast %47 : vector<1x1x256x256xbf16> to vector<256x256xbf16>
      %cst_47 = arith.constant dense<0.000000e+00> : vector<2x256xf32>
      %49 = tpu.matmul %26, %48, %cst_47 {dimension_numbers = #tpu.dot_dimension_numbers<[1], [0], [0], [1], [0, 0, 1, 1], [], []>} : vector<2x256xbf16>, vector<256x256xbf16>, vector<2x256xf32> -> vector<2x256xf32>
      %50 = arith.addf %46, %49 : vector<2x256xf32>
      %51 = arith.truncf %18 : vector<2x256xf32> to vector<2x256xbf16>
      %52 = arith.extf %51 : vector<2x256xbf16> to vector<2x256xf32>
      %53 = arith.subf %18, %52 : vector<2x256xf32>
      %54 = arith.truncf %53 : vector<2x256xf32> to vector<2x256xbf16>
      %55 = arith.extf %54 : vector<2x256xbf16> to vector<2x256xf32>
      %56 = arith.subf %53, %55 : vector<2x256xf32>
      %57 = arith.truncf %56 : vector<2x256xf32> to vector<2x256xbf16>
      %c1_48 = arith.constant 1 : index
      %c0_49 = arith.constant 0 : index
      %c0_50 = arith.constant 0 : index
      %c0_51 = arith.constant 0 : index
      %58 = vector.load %arg2[%c1_48, %c0_49, %c0_50, %c0_51] : memref<2x3x256x256xbf16, #tpu.memory_space<vmem>>, vector<1x1x256x256xbf16>
      %59 = vector.shape_cast %58 : vector<1x1x256x256xbf16> to vector<256x256xbf16>
      %cst_52 = arith.constant dense<0.000000e+00> : vector<2x256xf32>
      %60 = tpu.matmul %51, %59, %cst_52 {dimension_numbers = #tpu.dot_dimension_numbers<[1], [0], [0], [1], [0, 0, 1, 1], [], []>} : vector<2x256xbf16>, vector<256x256xbf16>, vector<2x256xf32> -> vector<2x256xf32>
      %61 = arith.addf %50, %60 : vector<2x256xf32>
      %c1_53 = arith.constant 1 : index
      %c1_54 = arith.constant 1 : index
      %c0_55 = arith.constant 0 : index
      %c0_56 = arith.constant 0 : index
      %62 = vector.load %arg2[%c1_53, %c1_54, %c0_55, %c0_56] : memref<2x3x256x256xbf16, #tpu.memory_space<vmem>>, vector<1x1x256x256xbf16>
      %63 = vector.shape_cast %62 : vector<1x1x256x256xbf16> to vector<256x256xbf16>
      %cst_57 = arith.constant dense<0.000000e+00> : vector<2x256xf32>
      %64 = tpu.matmul %51, %63, %cst_57 {dimension_numbers = #tpu.dot_dimension_numbers<[1], [0], [0], [1], [0, 0, 1, 1], [], []>} : vector<2x256xbf16>, vector<256x256xbf16>, vector<2x256xf32> -> vector<2x256xf32>
      %65 = arith.addf %61, %64 : vector<2x256xf32>
      %c1_58 = arith.constant 1 : index
      %c2_59 = arith.constant 2 : index
      %c0_60 = arith.constant 0 : index
      %c0_61 = arith.constant 0 : index
      %66 = vector.load %arg2[%c1_58, %c2_59, %c0_60, %c0_61] : memref<2x3x256x256xbf16, #tpu.memory_space<vmem>>, vector<1x1x256x256xbf16>
      %67 = vector.shape_cast %66 : vector<1x1x256x256xbf16> to vector<256x256xbf16>
      %cst_62 = arith.constant dense<0.000000e+00> : vector<2x256xf32>
      %68 = tpu.matmul %51, %67, %cst_62 {dimension_numbers = #tpu.dot_dimension_numbers<[1], [0], [0], [1], [0, 0, 1, 1], [], []>} : vector<2x256xbf16>, vector<256x256xbf16>, vector<2x256xf32> -> vector<2x256xf32>
      %69 = arith.addf %65, %68 : vector<2x256xf32>
      %c1_63 = arith.constant 1 : index
      %c0_64 = arith.constant 0 : index
      %c0_65 = arith.constant 0 : index
      %c0_66 = arith.constant 0 : index
      %70 = vector.load %arg2[%c1_63, %c0_64, %c0_65, %c0_66] : memref<2x3x256x256xbf16, #tpu.memory_space<vmem>>, vector<1x1x256x256xbf16>
      %71 = vector.shape_cast %70 : vector<1x1x256x256xbf16> to vector<256x256xbf16>
      %cst_67 = arith.constant dense<0.000000e+00> : vector<2x256xf32>
      %72 = tpu.matmul %54, %71, %cst_67 {dimension_numbers = #tpu.dot_dimension_numbers<[1], [0], [0], [1], [0, 0, 1, 1], [], []>} : vector<2x256xbf16>, vector<256x256xbf16>, vector<2x256xf32> -> vector<2x256xf32>
      %73 = arith.addf %69, %72 : vector<2x256xf32>
      %c1_68 = arith.constant 1 : index
      %c1_69 = arith.constant 1 : index
      %c0_70 = arith.constant 0 : index
      %c0_71 = arith.constant 0 : index
      %74 = vector.load %arg2[%c1_68, %c1_69, %c0_70, %c0_71] : memref<2x3x256x256xbf16, #tpu.memory_space<vmem>>, vector<1x1x256x256xbf16>
      %75 = vector.shape_cast %74 : vector<1x1x256x256xbf16> to vector<256x256xbf16>
      %cst_72 = arith.constant dense<0.000000e+00> : vector<2x256xf32>
      %76 = tpu.matmul %54, %75, %cst_72 {dimension_numbers = #tpu.dot_dimension_numbers<[1], [0], [0], [1], [0, 0, 1, 1], [], []>} : vector<2x256xbf16>, vector<256x256xbf16>, vector<2x256xf32> -> vector<2x256xf32>
      %77 = arith.addf %73, %76 : vector<2x256xf32>
      %c1_73 = arith.constant 1 : index
      %c0_74 = arith.constant 0 : index
      %c0_75 = arith.constant 0 : index
      %c0_76 = arith.constant 0 : index
      %78 = vector.load %arg2[%c1_73, %c0_74, %c0_75, %c0_76] : memref<2x3x256x256xbf16, #tpu.memory_space<vmem>>, vector<1x1x256x256xbf16>
      %79 = vector.shape_cast %78 : vector<1x1x256x256xbf16> to vector<256x256xbf16>
      %cst_77 = arith.constant dense<0.000000e+00> : vector<2x256xf32>
      %80 = tpu.matmul %57, %79, %cst_77 {dimension_numbers = #tpu.dot_dimension_numbers<[1], [0], [0], [1], [0, 0, 1, 1], [], []>} : vector<2x256xbf16>, vector<256x256xbf16>, vector<2x256xf32> -> vector<2x256xf32>
      %81 = arith.addf %77, %80 : vector<2x256xf32>
      %cst_78 = arith.constant 0.000000e+00 : f32
      %82 = vector.broadcast %cst_78 : f32 to vector<2x256xf32>
      %83 = arith.subf %82, %81 : vector<2x256xf32>
      %84 = math.exp %83 : vector<2x256xf32>
      %cst_79 = arith.constant 1.000000e+00 : f32
      %85 = vector.broadcast %cst_79 : f32 to vector<2x256xf32>
      %86 = arith.addf %85, %84 : vector<2x256xf32>
      %cst_80 = arith.constant 1.000000e+00 : f32
      %87 = vector.broadcast %cst_80 : f32 to vector<2x256xf32>
      %88 = arith.divf %87, %86 : vector<2x256xf32>
      %c0_81 = arith.constant 0 : index
      %c0_82 = arith.constant 0 : index
      %c0_83 = arith.constant 0 : index
      %89 = vector.load %arg4[%c0_81, %c0_82, %c0_83] : memref<2x1x256xf32, #tpu.memory_space<vmem>>, vector<2x1x256xf32>
      %90 = vector.shape_cast %89 : vector<2x1x256xf32> to vector<2x256xf32>
      %91 = vector.shape_cast %88 : vector<2x256xf32> to vector<2x1x256xf32>
      tpu.vector_store %arg4[%c0_81, %c0_82, %c0_83], %91 {strides = array<i32>} : memref<2x1x256xf32, #tpu.memory_space<vmem>>, vector<2x1x256xf32>,
    } else {
    }
    return
  }
  func.func @transform_0(%arg0: i32, %arg1: i32) -> (i32, i32, i32, i32) {
    %c0_i32 = arith.constant 0 : i32
    %c0_i32_0 = arith.constant 0 : i32
    %c0_i32_1 = arith.constant 0 : i32
    %c0_i32_2 = arith.constant 0 : i32
    %c0_i32_3 = arith.constant 0 : i32
    return %c0_i32, %c0_i32_0, %c0_i32_1, %c0_i32_2 : i32, i32, i32, i32
  }
  func.func @transform_1(%arg0: i32, %arg1: i32) -> (i32, i32, i32) {
    %c0_i32 = arith.constant 0 : i32
    %c0_i32_0 = arith.constant 0 : i32
    return %arg0, %arg1, %c0_i32 : i32, i32, i32
  }
  func.func @transform_2(%arg0: i32, %arg1: i32) -> (i32, i32, i32) {
    %c0_i32 = arith.constant 0 : i32
    %c0_i32_0 = arith.constant 0 : i32
    %c0_i32_1 = arith.constant 0 : i32
    return %arg0, %c0_i32, %c0_i32_0 : i32, i32, i32
  }
}

</mosaic_0001>

<llo_original>
// kernel: tpu_custom_call.1
$region0: #{tpu_custom_call.1}
  #allocation0 [shape = 'u32[]', space=smem, size = 0x4, offset = 0x4, fixed_abs, tag = 'smem constant byte address 0x4 - core index']
  #allocation1 [shape = 'u32[144,128]{1,0:T(1,128)}', space=vmem, size = 0x12000, scoped, tag = 'internal scratch']
  #allocation2 [shape = 'f32[2,256]{1,0:T(2,128)}', space=vmem, size = 0x800, scoped, tag = 'scratch operand']
  #allocation3 [shape = 'f32[2,256]{1,0:T(2,128)}', space=vmem, size = 0x800, scoped, tag = 'scratch operand']
  %s0 = inlined_call_operand.hbm [shape: bf16[2,3,256,256], index: 0, kind: input, shape index: {}]
  %s1 = inlined_call_operand.hbm [shape: f32[2,4,256], index: 1, kind: input, shape index: {}]
  %s2 = inlined_call_operand.hbm [shape: f32[2,1,256], index: 2, kind: output, shape index: {}]
  %s3 = sld [smem:[#allocation0]]
  $region34: #{tpu_custom_call.1} parent=0
    _
  %s5 = ssub.s32 1, %s3
  %s6 = scalar_select 0, %s5, %s3
  $region1: #{tpu_custom_call.1} parent=0
    #allocation4 [shape = 'u8[786432]{0}', space=vmem, size = 0xc0000, scoped, tag = 'input window, operand 0, single buffered']
    #allocation5 [shape = 's32[1]{0}', space=sflag, size = 0x4, scoped, tag = 'scoped memory for tpu_custom_call.1']
    #allocation6 [shape = 's32[1]{0}', space=sflag, size = 0x4, scoped, tag = 'scoped memory for tpu_custom_call.1']
    #allocation7 [shape = 'u8[8192]{0}', space=vmem, size = 0x2000, scoped, tag = 'input window, operand 1, single buffered']
    #allocation8 [shape = 's32[1]{0}', space=sflag, size = 0x4, scoped, tag = 'scoped memory for tpu_custom_call.1']
    #allocation9 [shape = 'u8[2048]{0}', space=vmem, size = 0x800, scoped, tag = 'output window, operand 0, single buffered']
    %7 = vsyncpa [#allocation5], 0
    %8 = vsyncpa [#allocation8], 0
    %9 = vsyncpa [#allocation6], 0
    // Predicated region
    $region2: #{tpu_custom_call.1} parent=1 // pred_check
      _
    $region3: #{tpu_custom_call.1} parent=1 // pred_check_branch
      %11 = sbr.rel (0) target = $region5
    $region4: #{tpu_custom_call.1} parent=1 // pred_region
      %s13 = ssub.s32 24576, 24576
      %14 = vsyncadd [#allocation5], %s13
      %s15 = sshll.u32 [#allocation4], 4
      %s16 = int_to_ptr.vmem [resolvable:$true] %s15
      %21 = dma.hbm_to_vmem [thread:$0]  %s0, 24576, %s16, [#allocation5], 128, 128, 8
    $region5: #{tpu_custom_call.1} parent=1 // pred_fallthru
      _
    // Predicated region
    $region6: #{tpu_custom_call.1} parent=1 // pred_check
      _
    $region7: #{tpu_custom_call.1} parent=1 // pred_check_branch
      %23 = sbr.rel (0) target = $region9
    $region8: #{tpu_custom_call.1} parent=1 // pred_region
      %s25 = ssub.s32 256, 256
      %26 = vsyncadd [#allocation8], %s25
      %s27 = sshll.u32 [#allocation7], 4
      %s28 = int_to_ptr.vmem [resolvable:$true] %s27
      %33 = dma.hbm_to_vmem [thread:$0]  %s1, 256, %s28, [#allocation8], 128, 128, 8
    $region9: #{tpu_custom_call.1} parent=1 // pred_fallthru
      _
    // Predicated region
    $region10: #{tpu_custom_call.1} parent=1 // pred_check
      _
    $region11: #{tpu_custom_call.1} parent=1 // pred_check_branch
      %35 = sbr.rel (0) target = $region13
    $region12: #{tpu_custom_call.1} parent=1 // pred_region
      %36 = dma.done [#allocation5], 24576
    $region13: #{tpu_custom_call.1} parent=1 // pred_fallthru
      _
    // Predicated region
    $region14: #{tpu_custom_call.1} parent=1 // pred_check
      _
    $region15: #{tpu_custom_call.1} parent=1 // pred_check_branch
      %38 = sbr.rel (0) target = $region17
    $region16: #{tpu_custom_call.1} parent=1 // pred_region
      %39 = dma.done [#allocation8], 256
    $region17: #{tpu_custom_call.1} parent=1 // pred_fallthru
      _
    %p40 = scmp.eq.s32.totalorder 0, 0
    // Predicated region
    $region18: #{tpu_custom_call.1} parent=1 // pred_check
      %p41 = pneg %p40
    $region19: #{tpu_custom_call.1} parent=1 // pred_check_branch
      %43 = sbr.rel (%p41) target = $region21
    $region20: #{tpu_custom_call.1} parent=1 // pred_region
      %44 = vst [vmem:[#allocation2] sm:$0xf] 0.0
      %45 = vst [vmem:[#allocation3] sm:$0xf] -inf
    $region21: #{tpu_custom_call.1} parent=1 // pred_fallthru
      _
    %v46 = vld [vmem:[#allocation7] sm:$0xff]
    %v47 = vld [vmem:[#allocation7 + $0x8] sm:$0xff]
    %v48 = vld [vmem:[#allocation2] sm:$0xf]
    %v51 = vcombine.high %v46, %v46
    %v52 = vcombine.high %v47, %v47
    %vm55 = vcmask 1043456
    %v56 = vsel %vm55, %v46, 0.0
    %v57 = vrot.slane %v56, 4
    %v58 = vadd.f32 %v56, %v57
    %v59 = vrot.slane %v58, 2
    %v60 = vadd.f32 %v58, %v59
    %v61 = vrot.slane %v60, 1
    %v62 = vadd.f32 %v60, %v61
    %v63 = vsel %vm55, %v51, 0.0
    %v64 = vrot.slane %v63, 4
    %v65 = vadd.f32 %v63, %v64
    %v66 = vrot.slane %v65, 2
    %v67 = vadd.f32 %v65, %v66
    %v68 = vrot.slane %v67, 1
    %v69 = vadd.f32 %v67, %v68
    %v70 = vsel %vm55, %v47, 0.0
    %v71 = vrot.slane %v70, 4
    %v72 = vadd.f32 %v70, %v71
    %v73 = vrot.slane %v72, 2
    %v74 = vadd.f32 %v72, %v73
    %v75 = vrot.slane %v74, 1
    %v76 = vadd.f32 %v74, %v75
    %v77 = vsel %vm55, %v52, 0.0
    %v78 = vrot.slane %v77, 4
    %v79 = vadd.f32 %v77, %v78
    %v80 = vrot.slane %v79, 2
    %v81 = vadd.f32 %v79, %v80
    %v82 = vrot.slane %v81, 1
    %v83 = vadd.f32 %v81, %v82
    %v88 = vcombine.low %v62, %v69
    %v90 = vunpack.c.l.s4 1983009808
    %v91 = vunpack.c.0.s8 %v90
    %v92 = vlaneseq
    %v93 = vshrl.u32 %v92, 7
    %v94 = vsub.s32 %v91, %v93
    %v95 = vrot.slane %v88, %v94
    %v96 = vcombine.low %v76, %v83
    %v98 = vunpack.c.l.s4 1983009808
    %v99 = vunpack.c.0.s8 %v98
    %v100 = vlaneseq
    %v101 = vshrl.u32 %v100, 7
    %v102 = vsub.s32 %v99, %v101
    %v103 = vrot.slane %v96, %v102
    %vm104 = vcmask 1044484
    %v105 = vsel %vm104, %v95, %v95
    %vm106 = vcmask 1046534
    %v107 = vsel %vm106, %v95, %v105
    %v108 = vrot.slane %v103, 7
    %vm109 = vcmask 1041409
    %v110 = vsel %vm109, %v108, %v107
    %vm111 = vcmask 1043459
    %v112 = vsel %vm111, %v108, %v110
    %vm113 = vcmask 1045509
    %v114 = vsel %vm113, %v108, %v112
    %vm115 = vcmask 1047559
    %v116 = vsel %vm115, %v108, %v114
    %v118 = vadd.f32 %v48, %v116
    %119 = vst [vmem:[#allocation2] sm:$0xf] %v118
    %v120 = vld [vmem:[#allocation3] sm:$0xf]
    %v121 = vsel %vm55, %v46, -inf
    %v122 = vrot.slane %v121, 4
    %v123 = vmax.f32 %v121, %v122
    %v124 = vrot.slane %v123, 2
    %v125 = vmax.f32 %v123, %v124
    %v126 = vrot.slane %v125, 1
    %v127 = vmax.f32 %v125, %v126
    %v128 = vsel %vm55, %v51, -inf
    %v129 = vrot.slane %v128, 4
    %v130 = vmax.f32 %v128, %v129
    %v131 = vrot.slane %v130, 2
    %v132 = vmax.f32 %v130, %v131
    %v133 = vrot.slane %v132, 1
    %v134 = vmax.f32 %v132, %v133
    %v135 = vsel %vm55, %v47, -inf
    %v136 = vrot.slane %v135, 4
    %v137 = vmax.f32 %v135, %v136
    %v138 = vrot.slane %v137, 2
    %v139 = vmax.f32 %v137, %v138
    %v140 = vrot.slane %v139, 1
    %v141 = vmax.f32 %v139, %v140
    %v142 = vsel %vm55, %v52, -inf
    %v143 = vrot.slane %v142, 4
    %v144 = vmax.f32 %v142, %v143
    %v145 = vrot.slane %v144, 2
    %v146 = vmax.f32 %v144, %v145
    %v147 = vrot.slane %v146, 1
    %v148 = vmax.f32 %v146, %v147
    %v153 = vcombine.low %v127, %v134
    %v155 = vunpack.c.l.s4 1983009808
    %v156 = vunpack.c.0.s8 %v155
    %v157 = vlaneseq
    %v158 = vshrl.u32 %v157, 7
    %v159 = vsub.s32 %v156, %v158
    %v160 = vrot.slane %v153, %v159
    %v161 = vcombine.low %v141, %v148
    %v163 = vunpack.c.l.s4 1983009808
    %v164 = vunpack.c.0.s8 %v163
    %v165 = vlaneseq
    %v166 = vshrl.u32 %v165, 7
    %v167 = vsub.s32 %v164, %v166
    %v168 = vrot.slane %v161, %v167
    %v169 = vsel %vm104, %v160, %v160
    %v170 = vsel %vm106, %v160, %v169
    %v171 = vrot.slane %v168, 7
    %v172 = vsel %vm109, %v171, %v170
    %v173 = vsel %vm111, %v171, %v172
    %v174 = vsel %vm113, %v171, %v173
    %v175 = vsel %vm115, %v171, %v174
    %v177 = vmax.f32 %v120, %v175
    %178 = vst [vmem:[#allocation3] sm:$0xf] %v177
    // Predicated region
    $region22: #{tpu_custom_call.1} parent=1 // pred_check
      %p179 = pneg %p40
    $region23: #{tpu_custom_call.1} parent=1 // pred_check_branch
      %181 = sbr.rel (%p179) target = $region25
    $region24: #{tpu_custom_call.1} parent=1 // pred_region
      %v182 = vld [vmem:[#allocation2] sm:$0xf]
      %v183 = vmul.f32 %v182, 0.25
      %v184 = vld [vmem:[#allocation3] sm:$0xf]
      %v187 = vunpack.c.l.s4 1983009808
      %v188 = vunpack.c.0.s8 %v187
      %v189 = vlaneseq
      %v190 = vshrl.u32 %v189, 7
      %v191 = vsub.s32 %v188, %v190
      %v192 = vrot.slane %v183, %v191
      %v193 = vcombine.high %v192, %v192
      %v196 = vpack.c.bf16 %v192, %v192
      %v197 = vpack.c.bf16 %v193, %v193
      %v198 = vunpack.c.l.bf16 %v196
      %v199 = vunpack.c.l.bf16 %v197
      %v202 = vcombine.low %v198, %v199
      %v204 = vunpack.c.l.s4 1983009808
      %v205 = vunpack.c.0.s8 %v204
      %v206 = vlaneseq
      %v207 = vshrl.u32 %v206, 7
      %v208 = vsub.s32 %v205, %v207
      %v209 = vrot.slane %v202, %v208
      %v211 = vsub.f32 %v183, %v209
      %v214 = vunpack.c.l.s4 1983009808
      %v215 = vunpack.c.0.s8 %v214
      %v216 = vlaneseq
      %v217 = vshrl.u32 %v216, 7
      %v218 = vsub.s32 %v215, %v217
      %v219 = vrot.slane %v211, %v218
      %v220 = vcombine.high %v219, %v219
      %v223 = vpack.c.bf16 %v219, %v219
      %v224 = vpack.c.bf16 %v220, %v220
      %v225 = vunpack.c.l.bf16 %v223
      %v226 = vunpack.c.l.bf16 %v224
      %v229 = vcombine.low %v225, %v226
      %v231 = vunpack.c.l.s4 1983009808
      %v232 = vunpack.c.0.s8 %v231
      %v233 = vlaneseq
      %v234 = vshrl.u32 %v233, 7
      %v235 = vsub.s32 %v232, %v234
      %v236 = vrot.slane %v229, %v235
      %v238 = vsub.f32 %v211, %v236
      %v241 = vunpack.c.l.s4 1983009808
      %v242 = vunpack.c.0.s8 %v241
      %v243 = vlaneseq
      %v244 = vshrl.u32 %v243, 7
      %v245 = vsub.s32 %v242, %v244
      %v246 = vrot.slane %v238, %v245
      %v247 = vcombine.high %v246, %v246
      %v250 = vpack.c.bf16 %v246, %v246
      %v251 = vpack.c.bf16 %v247, %v247
      %v252 = vld [vmem:[#allocation4] sm:$0xff]
      %v253 = vld [vmem:[#allocation4 + $0x8] sm:$0xff]
      %v254 = vld [vmem:[#allocation4 + $0x10] sm:$0xff]
      %v255 = vld [vmem:[#allocation4 + $0x18] sm:$0xff]
      %v256 = vld [vmem:[#allocation4 + $0x20] sm:$0xff]
      %v257 = vld [vmem:[#allocation4 + $0x28] sm:$0xff]
      %v258 = vld [vmem:[#allocation4 + $0x30] sm:$0xff]
      %v259 = vld [vmem:[#allocation4 + $0x38] sm:$0xff]
      %v260 = vld [vmem:[#allocation4 + $0x40] sm:$0xff]
      %v261 = vld [vmem:[#allocation4 + $0x48] sm:$0xff]
      %v262 = vld [vmem:[#allocation4 + $0x50] sm:$0xff]
      %v263 = vld [vmem:[#allocation4 + $0x58] sm:$0xff]
      %v264 = vld [vmem:[#allocation4 + $0x60] sm:$0xff]
      %v265 = vld [vmem:[#allocation4 + $0x68] sm:$0xff]
      %v266 = vld [vmem:[#allocation4 + $0x70] sm:$0xff]
      %v267 = vld [vmem:[#allocation4 + $0x78] sm:$0xff]
      %v268 = vld [vmem:[#allocation4 + $0x80] sm:$0xff]
      %v269 = vld [vmem:[#allocation4 + $0x88] sm:$0xff]
      %v270 = vld [vmem:[#allocation4 + $0x90] sm:$0xff]
      %v271 = vld [vmem:[#allocation4 + $0x98] sm:$0xff]
      %v272 = vld [vmem:[#allocation4 + $0xa0] sm:$0xff]
      %v273 = vld [vmem:[#allocation4 + $0xa8] sm:$0xff]
      %v274 = vld [vmem:[#allocation4 + $0xb0] sm:$0xff]
      %v275 = vld [vmem:[#allocation4 + $0xb8] sm:$0xff]
      %v276 = vld [vmem:[#allocation4 + $0xc0] sm:$0xff]
      %v277 = vld [vmem:[#allocation4 + $0xc8] sm:$0xff]
      %v278 = vld [vmem:[#allocation4 + $0xd0] sm:$0xff]
      %v279 = vld [vmem:[#allocation4 + $0xd8] sm:$0xff]
      %v280 = vld [vmem:[#allocation4 + $0xe0] sm:$0xff]
      %v281 = vld [vmem:[#allocation4 + $0xe8] sm:$0xff]
      %v282 = vld [vmem:[#allocation4 + $0xf0] sm:$0xff]
      %v283 = vld [vmem:[#allocation4 + $0xf8] sm:$0xff]
      %s284 = scalar_lea.vmem [#allocation4], 256
      %v285 = vld [vmem:[%s284] sm:$0xff]
      %v286 = vld [vmem:[%s284 + $0x8] sm:$0xff]
      %v287 = vld [vmem:[%s284 + $0x10] sm:$0xff]
      %v288 = vld [vmem:[%s284 + $0x18] sm:$0xff]
      %v289 = vld [vmem:[%s284 + $0x20] sm:$0xff]
      %v290 = vld [vmem:[%s284 + $0x28] sm:$0xff]
      %v291 = vld [vmem:[%s284 + $0x30] sm:$0xff]
      %v292 = vld [vmem:[%s284 + $0x38] sm:$0xff]
      %v293 = vld [vmem:[%s284 + $0x40] sm:$0xff]
      %v294 = vld [vmem:[%s284 + $0x48] sm:$0xff]
      %v295 = vld [vmem:[%s284 + $0x50] sm:$0xff]
      %v296 = vld [vmem:[%s284 + $0x58] sm:$0xff]
      %v297 = vld [vmem:[%s284 + $0x60] sm:$0xff]
      %v298 = vld [vmem:[%s284 + $0x68] sm:$0xff]
      %v299 = vld [vmem:[%s284 + $0x70] sm:$0xff]
      %v300 = vld [vmem:[%s284 + $0x78] sm:$0xff]
      %v301 = vld [vmem:[%s284 + $0x80] sm:$0xff]
      %v302 = vld [vmem:[%s284 + $0x88] sm:$0xff]
      %v303 = vld [vmem:[%s284 + $0x90] sm:$0xff]
      %v304 = vld [vmem:[%s284 + $0x98] sm:$0xff]
      %v305 = vld [vmem:[%s284 + $0xa0] sm:$0xff]
      %v306 = vld [vmem:[%s284 + $0xa8] sm:$0xff]
      %v307 = vld [vmem:[%s284 + $0xb0] sm:$0xff]
      %v308 = vld [vmem:[%s284 + $0xb8] sm:$0xff]
      %v309 = vld [vmem:[%s284 + $0xc0] sm:$0xff]
      %v310 = vld [vmem:[%s284 + $0xc8] sm:$0xff]
      %v311 = vld [vmem:[%s284 + $0xd0] sm:$0xff]
      %v312 = vld [vmem:[%s284 + $0xd8] sm:$0xff]
      %v313 = vld [vmem:[%s284 + $0xe0] sm:$0xff]
      %v314 = vld [vmem:[%s284 + $0xe8] sm:$0xff]
      %v315 = vld [vmem:[%s284 + $0xf0] sm:$0xff]
      %v316 = vld [vmem:[%s284 + $0xf8] sm:$0xff]
      %v349 = vunpack.c.l.b16 %v285
      %v350 = vunpack.c.h.b16 %v285
      %v351 = vunpack.c.l.b16 %v286
      %v352 = vunpack.c.h.b16 %v286
      %v353 = vunpack.c.l.b16 %v287
      %v354 = vunpack.c.h.b16 %v287
      %v355 = vunpack.c.l.b16 %v288
      %v356 = vunpack.c.h.b16 %v288
      %v357 = vunpack.c.l.b16 %v289
      %v358 = vunpack.c.h.b16 %v289
      %v359 = vunpack.c.l.b16 %v290
      %v360 = vunpack.c.h.b16 %v290
      %v361 = vunpack.c.l.b16 %v291
      %v362 = vunpack.c.h.b16 %v291
      %v363 = vunpack.c.l.b16 %v292
      %v364 = vunpack.c.h.b16 %v292
      %v365 = vunpack.c.l.b16 %v293
      %v366 = vunpack.c.h.b16 %v293
      %v367 = vunpack.c.l.b16 %v294
      %v368 = vunpack.c.h.b16 %v294
      %v369 = vunpack.c.l.b16 %v295
      %v370 = vunpack.c.h.b16 %v295
      %v371 = vunpack.c.l.b16 %v296
      %v372 = vunpack.c.h.b16 %v296
      %v373 = vunpack.c.l.b16 %v297
      %v374 = vunpack.c.h.b16 %v297
      %v375 = vunpack.c.l.b16 %v298
      %v376 = vunpack.c.h.b16 %v298
      %v377 = vunpack.c.l.b16 %v299
      %v378 = vunpack.c.h.b16 %v299
      %v379 = vunpack.c.l.b16 %v300
      %v380 = vunpack.c.h.b16 %v300
      %v381 = vunpack.c.l.b16 %v301
      %v382 = vunpack.c.h.b16 %v301
      %v383 = vunpack.c.l.b16 %v302
      %v384 = vunpack.c.h.b16 %v302
      %v385 = vunpack.c.l.b16 %v303
      %v386 = vunpack.c.h.b16 %v303
      %v387 = vunpack.c.l.b16 %v304
      %v388 = vunpack.c.h.b16 %v304
      %v389 = vunpack.c.l.b16 %v305
      %v390 = vunpack.c.h.b16 %v305
      %v391 = vunpack.c.l.b16 %v306
      %v392 = vunpack.c.h.b16 %v306
      %v393 = vunpack.c.l.b16 %v307
      %v394 = vunpack.c.h.b16 %v307
      %v395 = vunpack.c.l.b16 %v308
      %v396 = vunpack.c.h.b16 %v308
      %v397 = vunpack.c.l.b16 %v309
      %v398 = vunpack.c.h.b16 %v309
      %v399 = vunpack.c.l.b16 %v310
      %v400 = vunpack.c.h.b16 %v310
      %v401 = vunpack.c.l.b16 %v311
      %v402 = vunpack.c.h.b16 %v311
      %v403 = vunpack.c.l.b16 %v312
      %v404 = vunpack.c.h.b16 %v312
      %v405 = vunpack.c.l.b16 %v313
      %v406 = vunpack.c.h.b16 %v313
      %v407 = vunpack.c.l.b16 %v314
      %v408 = vunpack.c.h.b16 %v314
      %v409 = vunpack.c.l.b16 %v315
      %v410 = vunpack.c.h.b16 %v315
      %v411 = vunpack.c.l.b16 %v316
      %v412 = vunpack.c.h.b16 %v316
      %v413 = vpack.c.b16 %v351, %v349
      %v414 = vpack.c.b16 %v352, %v350
      %v415 = vpack.c.b16 %v355, %v353
      %v416 = vpack.c.b16 %v356, %v354
      %v417 = vpack.c.b16 %v359, %v357
      %v418 = vpack.c.b16 %v360, %v358
      %v419 = vpack.c.b16 %v363, %v361
      %v420 = vpack.c.b16 %v364, %v362
      %v421 = vpack.c.b16 %v367, %v365
      %v422 = vpack.c.b16 %v368, %v366
      %v423 = vpack.c.b16 %v371, %v369
      %v424 = vpack.c.b16 %v372, %v370
      %v425 = vpack.c.b16 %v375, %v373
      %v426 = vpack.c.b16 %v376, %v374
      %v427 = vpack.c.b16 %v379, %v377
      %v428 = vpack.c.b16 %v380, %v378
      %v429 = vpack.c.b16 %v383, %v381
      %v430 = vpack.c.b16 %v384, %v382
      %v431 = vpack.c.b16 %v387, %v385
      %v432 = vpack.c.b16 %v388, %v386
      %v433 = vpack.c.b16 %v391, %v389
      %v434 = vpack.c.b16 %v392, %v390
      %v435 = vpack.c.b16 %v395, %v393
      %v436 = vpack.c.b16 %v396, %v394
      %v437 = vpack.c.b16 %v399, %v397
      %v438 = vpack.c.b16 %v400, %v398
      %v439 = vpack.c.b16 %v403, %v401
      %v440 = vpack.c.b16 %v404, %v402
      %v441 = vpack.c.b16 %v407, %v405
      %v442 = vpack.c.b16 %v408, %v406
      %v443 = vpack.c.b16 %v411, %v409
      %v444 = vpack.c.b16 %v412, %v410
      %477 = vmatprep.subr.bf16.mxu0 %v428
      %478 = vmatpush1.bf16.msra.mxu0 %v427
      %479 = vmatprep.subr.bf16.mxu0 %v426
      %480 = vmatpush1.bf16.msra.mxu0 %v425
      %481 = vmatprep.subr.bf16.mxu0 %v424
      %482 = vmatpush1.bf16.msra.mxu0 %v423
      %483 = vmatprep.subr.bf16.mxu0 %v422
      %484 = vmatpush1.bf16.msra.mxu0 %v421
      %485 = vmatprep.subr.bf16.mxu0 %v420
      %486 = vmatpush1.bf16.msra.mxu0 %v419
      %487 = vmatprep.subr.bf16.mxu0 %v418
      %488 = vmatpush1.bf16.msra.mxu0 %v417
      %489 = vmatprep.subr.bf16.mxu0 %v416
      %490 = vmatpush1.bf16.msra.mxu0 %v415
      %491 = vmatprep.subr.bf16.mxu0 %v414
      %492 = vmatpush1.bf16.msra.mxu0 %v413
      %493 = vmatprep.subr.bf16.mxu0 %v444
      %494 = vmatpush2.bf16.msra.mxu0 %v443
      %495 = vmatprep.subr.bf16.mxu0 %v442
      %496 = vmatpush2.bf16.msra.mxu0 %v441
      %497 = vmatprep.subr.bf16.mxu0 %v440
      %498 = vmatpush2.bf16.msra.mxu0 %v439
      %499 = vmatprep.subr.bf16.mxu0 %v438
      %500 = vmatpush2.bf16.msra.mxu0 %v437
      %501 = vmatprep.subr.bf16.mxu0 %v436
      %502 = vmatpush2.bf16.msra.mxu0 %v435
      %503 = vmatprep.subr.bf16.mxu0 %v434
      %504 = vmatpush2.bf16.msra.mxu0 %v433
      %505 = vmatprep.subr.bf16.mxu0 %v432
      %506 = vmatpush2.bf16.msra.mxu0 %v431
      %507 = vmatprep.subr.bf16.mxu0 %v430
      %508 = vmatpush2.bf16.msra.mxu0 %v429
      %509 = vmatprep.mubr.bf16.mxu0 %v197
      %510 = vmatmul.mubr.bf16.gmra.mxu0 %v196
      %v511 = vpop.f32.mrf.mxu0
      %v512 = vadd.f32 0.0, %v511
      %v513 = vpop.f32.mrf.mxu0
      %v514 = vadd.f32 0.0, %v513
      %v515 = vpop.f32.mrf.mxu0
      %v516 = vpop.f32.mrf.mxu0
      %517 = vdwg.mxu0
      %v550 = vunpack.c.l.b16 %v252
      %v551 = vunpack.c.h.b16 %v252
      %v552 = vunpack.c.l.b16 %v253
      %v553 = vunpack.c.h.b16 %v253
      %v554 = vunpack.c.l.b16 %v254
      %v555 = vunpack.c.h.b16 %v254
      %v556 = vunpack.c.l.b16 %v255
      %v557 = vunpack.c.h.b16 %v255
      %v558 = vunpack.c.l.b16 %v256
      %v559 = vunpack.c.h.b16 %v256
      %v560 = vunpack.c.l.b16 %v257
      %v561 = vunpack.c.h.b16 %v257
      %v562 = vunpack.c.l.b16 %v258
      %v563 = vunpack.c.h.b16 %v258
      %v564 = vunpack.c.l.b16 %v259
      %v565 = vunpack.c.h.b16 %v259
      %v566 = vunpack.c.l.b16 %v260
      %v567 = vunpack.c.h.b16 %v260
      %v568 = vunpack.c.l.b16 %v261
      %v569 = vunpack.c.h.b16 %v261
      %v570 = vunpack.c.l.b16 %v262
      %v571 = vunpack.c.h.b16 %v262
      %v572 = vunpack.c.l.b16 %v263
      %v573 = vunpack.c.h.b16 %v263
      %v574 = vunpack.c.l.b16 %v264
      %v575 = vunpack.c.h.b16 %v264
      %v576 = vunpack.c.l.b16 %v265
      %v577 = vunpack.c.h.b16 %v265
      %v578 = vunpack.c.l.b16 %v266
      %v579 = vunpack.c.h.b16 %v266
      %v580 = vunpack.c.l.b16 %v267
      %v581 = vunpack.c.h.b16 %v267
      %v582 = vunpack.c.l.b16 %v268
      %v583 = vunpack.c.h.b16 %v268
      %v584 = vunpack.c.l.b16 %v269
      %v585 = vunpack.c.h.b16 %v269
      %v586 = vunpack.c.l.b16 %v270
      %v587 = vunpack.c.h.b16 %v270
      %v588 = vunpack.c.l.b16 %v271
      %v589 = vunpack.c.h.b16 %v271
      %v590 = vunpack.c.l.b16 %v272
      %v591 = vunpack.c.h.b16 %v272
      %v592 = vunpack.c.l.b16 %v273
      %v593 = vunpack.c.h.b16 %v273
      %v594 = vunpack.c.l.b16 %v274
      %v595 = vunpack.c.h.b16 %v274
      %v596 = vunpack.c.l.b16 %v275
      %v597 = vunpack.c.h.b16 %v275
      %v598 = vunpack.c.l.b16 %v276
      %v599 = vunpack.c.h.b16 %v276
      %v600 = vunpack.c.l.b16 %v277
      %v601 = vunpack.c.h.b16 %v277
      %v602 = vunpack.c.l.b16 %v278
      %v603 = vunpack.c.h.b16 %v278
      %v604 = vunpack.c.l.b16 %v279
      %v605 = vunpack.c.h.b16 %v279
      %v606 = vunpack.c.l.b16 %v280
      %v607 = vunpack.c.h.b16 %v280
      %v608 = vunpack.c.l.b16 %v281
      %v609 = vunpack.c.h.b16 %v281
      %v610 = vunpack.c.l.b16 %v282
      %v611 = vunpack.c.h.b16 %v282
      %v612 = vunpack.c.l.b16 %v283
      %v613 = vunpack.c.h.b16 %v283
      %v614 = vpack.c.b16 %v552, %v550
      %v615 = vpack.c.b16 %v553, %v551
      %v616 = vpack.c.b16 %v556, %v554
      %v617 = vpack.c.b16 %v557, %v555
      %v618 = vpack.c.b16 %v560, %v558
      %v619 = vpack.c.b16 %v561, %v559
      %v620 = vpack.c.b16 %v564, %v562
      %v621 = vpack.c.b16 %v565, %v563
      %v622 = vpack.c.b16 %v568, %v566
      %v623 = vpack.c.b16 %v569, %v567
      %v624 = vpack.c.b16 %v572, %v570
      %v625 = vpack.c.b16 %v573, %v571
      %v626 = vpack.c.b16 %v576, %v574
      %v627 = vpack.c.b16 %v577, %v575
      %v628 = vpack.c.b16 %v580, %v578
      %v629 = vpack.c.b16 %v581, %v579
      %v630 = vpack.c.b16 %v584, %v582
      %v631 = vpack.c.b16 %v585, %v583
      %v632 = vpack.c.b16 %v588, %v586
      %v633 = vpack.c.b16 %v589, %v587
      %v634 = vpack.c.b16 %v592, %v590
      %v635 = vpack.c.b16 %v593, %v591
      %v636 = vpack.c.b16 %v596, %v594
      %v637 = vpack.c.b16 %v597, %v595
      %v638 = vpack.c.b16 %v600, %v598
      %v639 = vpack.c.b16 %v601, %v599
      %v640 = vpack.c.b16 %v604, %v602
      %v641 = vpack.c.b16 %v605, %v603
      %v642 = vpack.c.b16 %v608, %v606
      %v643 = vpack.c.b16 %v609, %v607
      %v644 = vpack.c.b16 %v612, %v610
      %v645 = vpack.c.b16 %v613, %v611
      %678 = vmatprep.subr.bf16.mxu0 %v629
      %679 = vmatpush1.bf16.msra.mxu0 %v628
      %680 = vmatprep.subr.bf16.mxu0 %v627
      %681 = vmatpush1.bf16.msra.mxu0 %v626
      %682 = vmatprep.subr.bf16.mxu0 %v625
      %683 = vmatpush1.bf16.msra.mxu0 %v624
      %684 = vmatprep.subr.bf16.mxu0 %v623
      %685 = vmatpush1.bf16.msra.mxu0 %v622
      %686 = vmatprep.subr.bf16.mxu0 %v621
      %687 = vmatpush1.bf16.msra.mxu0 %v620
      %688 = vmatprep.subr.bf16.mxu0 %v619
      %689 = vmatpush1.bf16.msra.mxu0 %v618
      %690 = vmatprep.subr.bf16.mxu0 %v617
      %691 = vmatpush1.bf16.msra.mxu0 %v616
      %692 = vmatprep.subr.bf16.mxu0 %v615
      %693 = vmatpush1.bf16.msra.mxu0 %v614
      %694 = vmatprep.subr.bf16.mxu0 %v645
      %695 = vmatpush2.bf16.msra.mxu0 %v644
      %696 = vmatprep.subr.bf16.mxu0 %v643
      %697 = vmatpush2.bf16.msra.mxu0 %v642
      %698 = vmatprep.subr.bf16.mxu0 %v641
      %699 = vmatpush2.bf16.msra.mxu0 %v640
      %700 = vmatprep.subr.bf16.mxu0 %v639
      %701 = vmatpush2.bf16.msra.mxu0 %v638
      %702 = vmatprep.subr.bf16.mxu0 %v637
      %703 = vmatpush2.bf16.msra.mxu0 %v636
      %704 = vmatprep.subr.bf16.mxu0 %v635
      %705 = vmatpush2.bf16.msra.mxu0 %v634
      %706 = vmatprep.subr.bf16.mxu0 %v633
      %707 = vmatpush2.bf16.msra.mxu0 %v632
      %708 = vmatprep.subr.bf16.mxu0 %v631
      %709 = vmatpush2.bf16.msra.mxu0 %v630
      %710 = vmatprep.mubr.bf16.mxu0 %v197
      %711 = vmatmul.mubr.bf16.gmra.mxu0 %v196
      %v712 = vpop.f32.mrf.mxu0
      %v713 = vadd.f32 %v512, %v712
      %v714 = vpop.f32.mrf.mxu0
      %v715 = vadd.f32 %v514, %v714
      %v716 = vpop.f32.mrf.mxu0
      %v717 = vpop.f32.mrf.mxu0
      %718 = vdwg.mxu0
      %s719 = scalar_lea.vmem [#allocation4], 512
      %v720 = vld [vmem:[%s719] sm:$0xff]
      %v721 = vld [vmem:[%s719 + $0x8] sm:$0xff]
      %v722 = vld [vmem:[%s719 + $0x10] sm:$0xff]
      %v723 = vld [vmem:[%s719 + $0x18] sm:$0xff]
      %v724 = vld [vmem:[%s719 + $0x20] sm:$0xff]
      %v725 = vld [vmem:[%s719 + $0x28] sm:$0xff]
      %v726 = vld [vmem:[%s719 + $0x30] sm:$0xff]
      %v727 = vld [vmem:[%s719 + $0x38] sm:$0xff]
      %v728 = vld [vmem:[%s719 + $0x40] sm:$0xff]
      %v729 = vld [vmem:[%s719 + $0x48] sm:$0xff]
      %v730 = vld [vmem:[%s719 + $0x50] sm:$0xff]
      %v731 = vld [vmem:[%s719 + $0x58] sm:$0xff]
      %v732 = vld [vmem:[%s719 + $0x60] sm:$0xff]
      %v733 = vld [vmem:[%s719 + $0x68] sm:$0xff]
      %v734 = vld [vmem:[%s719 + $0x70] sm:$0xff]
      %v735 = vld [vmem:[%s719 + $0x78] sm:$0xff]
      %v736 = vld [vmem:[%s719 + $0x80] sm:$0xff]
      %v737 = vld [vmem:[%s719 + $0x88] sm:$0xff]
      %v738 = vld [vmem:[%s719 + $0x90] sm:$0xff]
      %v739 = vld [vmem:[%s719 + $0x98] sm:$0xff]
      %v740 = vld [vmem:[%s719 + $0xa0] sm:$0xff]
      %v741 = vld [vmem:[%s719 + $0xa8] sm:$0xff]
      %v742 = vld [vmem:[%s719 + $0xb0] sm:$0xff]
      %v743 = vld [vmem:[%s719 + $0xb8] sm:$0xff]
      %v744 = vld [vmem:[%s719 + $0xc0] sm:$0xff]
      %v745 = vld [vmem:[%s719 + $0xc8] sm:$0xff]
      %v746 = vld [vmem:[%s719 + $0xd0] sm:$0xff]
      %v747 = vld [vmem:[%s719 + $0xd8] sm:$0xff]
      %v748 = vld [vmem:[%s719 + $0xe0] sm:$0xff]
      %v749 = vld [vmem:[%s719 + $0xe8] sm:$0xff]
      %v750 = vld [vmem:[%s719 + $0xf0] sm:$0xff]
      %v751 = vld [vmem:[%s719 + $0xf8] sm:$0xff]
      %v784 = vunpack.c.l.b16 %v720
      %v785 = vunpack.c.h.b16 %v720
      %v786 = vunpack.c.l.b16 %v721
      %v787 = vunpack.c.h.b16 %v721
      %v788 = vunpack.c.l.b16 %v722
      %v789 = vunpack.c.h.b16 %v722
      %v790 = vunpack.c.l.b16 %v723
      %v791 = vunpack.c.h.b16 %v723
      %v792 = vunpack.c.l.b16 %v724
      %v793 = vunpack.c.h.b16 %v724
      %v794 = vunpack.c.l.b16 %v725
      %v795 = vunpack.c.h.b16 %v725
      %v796 = vunpack.c.l.b16 %v726
      %v797 = vunpack.c.h.b16 %v726
      %v798 = vunpack.c.l.b16 %v727
      %v799 = vunpack.c.h.b16 %v727
      %v800 = vunpack.c.l.b16 %v728
      %v801 = vunpack.c.h.b16 %v728
      %v802 = vunpack.c.l.b16 %v729
      %v803 = vunpack.c.h.b16 %v729
      %v804 = vunpack.c.l.b16 %v730
      %v805 = vunpack.c.h.b16 %v730
      %v806 = vunpack.c.l.b16 %v731
      %v807 = vunpack.c.h.b16 %v731
      %v808 = vunpack.c.l.b16 %v732
      %v809 = vunpack.c.h.b16 %v732
      %v810 = vunpack.c.l.b16 %v733
      %v811 = vunpack.c.h.b16 %v733
      %v812 = vunpack.c.l.b16 %v734
      %v813 = vunpack.c.h.b16 %v734
      %v814 = vunpack.c.l.b16 %v735
      %v815 = vunpack.c.h.b16 %v735
      %v816 = vunpack.c.l.b16 %v736
      %v817 = vunpack.c.h.b16 %v736
      %v818 = vunpack.c.l.b16 %v737
      %v819 = vunpack.c.h.b16 %v737
      %v820 = vunpack.c.l.b16 %v738
      %v821 = vunpack.c.h.b16 %v738
      %v822 = vunpack.c.l.b16 %v739
      %v823 = vunpack.c.h.b16 %v739
      %v824 = vunpack.c.l.b16 %v740
      %v825 = vunpack.c.h.b16 %v740
      %v826 = vunpack.c.l.b16 %v741
      %v827 = vunpack.c.h.b16 %v741
      %v828 = vunpack.c.l.b16 %v742
      %v829 = vunpack.c.h.b16 %v742
      %v830 = vunpack.c.l.b16 %v743
      %v831 = vunpack.c.h.b16 %v743
      %v832 = vunpack.c.l.b16 %v744
      %v833 = vunpack.c.h.b16 %v744
      %v834 = vunpack.c.l.b16 %v745
      %v835 = vunpack.c.h.b16 %v745
      %v836 = vunpack.c.l.b16 %v746
      %v837 = vunpack.c.h.b16 %v746
      %v838 = vunpack.c.l.b16 %v747
      %v839 = vunpack.c.h.b16 %v747
      %v840 = vunpack.c.l.b16 %v748
      %v841 = vunpack.c.h.b16 %v748
      %v842 = vunpack.c.l.b16 %v749
      %v843 = vunpack.c.h.b16 %v749
      %v844 = vunpack.c.l.b16 %v750
      %v845 = vunpack.c.h.b16 %v750
      %v846 = vunpack.c.l.b16 %v751
      %v847 = vunpack.c.h.b16 %v751
      %v848 = vpack.c.b16 %v786, %v784
      %v849 = vpack.c.b16 %v787, %v785
      %v850 = vpack.c.b16 %v790, %v788
      %v851 = vpack.c.b16 %v791, %v789
      %v852 = vpack.c.b16 %v794, %v792
      %v853 = vpack.c.b16 %v795, %v793
      %v854 = vpack.c.b16 %v798, %v796
      %v855 = vpack.c.b16 %v799, %v797
      %v856 = vpack.c.b16 %v802, %v800
      %v857 = vpack.c.b16 %v803, %v801
      %v858 = vpack.c.b16 %v806, %v804
      %v859 = vpack.c.b16 %v807, %v805
      %v860 = vpack.c.b16 %v810, %v808
      %v861 = vpack.c.b16 %v811, %v809
      %v862 = vpack.c.b16 %v814, %v812
      %v863 = vpack.c.b16 %v815, %v813
      %v864 = vpack.c.b16 %v818, %v816
      %v865 = vpack.c.b16 %v819, %v817
      %v866 = vpack.c.b16 %v822, %v820
      %v867 = vpack.c.b16 %v823, %v821
      %v868 = vpack.c.b16 %v826, %v824
      %v869 = vpack.c.b16 %v827, %v825
      %v870 = vpack.c.b16 %v830, %v828
      %v871 = vpack.c.b16 %v831, %v829
      %v872 = vpack.c.b16 %v834, %v832
      %v873 = vpack.c.b16 %v835, %v833
      %v874 = vpack.c.b16 %v838, %v836
      %v875 = vpack.c.b16 %v839, %v837
      %v876 = vpack.c.b16 %v842, %v840
      %v877 = vpack.c.b16 %v843, %v841
      %v878 = vpack.c.b16 %v846, %v844
      %v879 = vpack.c.b16 %v847, %v845
      %912 = vmatprep.subr.bf16.mxu0 %v863
      %913 = vmatpush1.bf16.msra.mxu0 %v862
      %914 = vmatprep.subr.bf16.mxu0 %v861
      %915 = vmatpush1.bf16.msra.mxu0 %v860
      %916 = vmatprep.subr.bf16.mxu0 %v859
      %917 = vmatpush1.bf16.msra.mxu0 %v858
      %918 = vmatprep.subr.bf16.mxu0 %v857
      %919 = vmatpush1.bf16.msra.mxu0 %v856
      %920 = vmatprep.subr.bf16.mxu0 %v855
      %921 = vmatpush1.bf16.msra.mxu0 %v854
      %922 = vmatprep.subr.bf16.mxu0 %v853
      %923 = vmatpush1.bf16.msra.mxu0 %v852
      %924 = vmatprep.subr.bf16.mxu0 %v851
      %925 = vmatpush1.bf16.msra.mxu0 %v850
      %926 = vmatprep.subr.bf16.mxu0 %v849
      %927 = vmatpush1.bf16.msra.mxu0 %v848
      %928 = vmatprep.subr.bf16.mxu0 %v879
      %929 = vmatpush2.bf16.msra.mxu0 %v878
      %930 = vmatprep.subr.bf16.mxu0 %v877
      %931 = vmatpush2.bf16.msra.mxu0 %v876
      %932 = vmatprep.subr.bf16.mxu0 %v875
      %933 = vmatpush2.bf16.msra.mxu0 %v874
      %934 = vmatprep.subr.bf16.mxu0 %v873
      %935 = vmatpush2.bf16.msra.mxu0 %v872
      %936 = vmatprep.subr.bf16.mxu0 %v871
      %937 = vmatpush2.bf16.msra.mxu0 %v870
      %938 = vmatprep.subr.bf16.mxu0 %v869
      %939 = vmatpush2.bf16.msra.mxu0 %v868
      %940 = vmatprep.subr.bf16.mxu0 %v867
      %941 = vmatpush2.bf16.msra.mxu0 %v866
      %942 = vmatprep.subr.bf16.mxu0 %v865
      %943 = vmatpush2.bf16.msra.mxu0 %v864
      %944 = vmatprep.mubr.bf16.mxu0 %v197
      %945 = vmatmul.mubr.bf16.gmra.mxu0 %v196
      %v946 = vpop.f32.mrf.mxu0
      %v947 = vadd.f32 0.0, %v946
      %v948 = vpop.f32.mrf.mxu0
      %v949 = vadd.f32 0.0, %v948
      %v950 = vpop.f32.mrf.mxu0
      %v951 = vpop.f32.mrf.mxu0
      %952 = vdwg.mxu0
      %v953 = vadd.f32 %v713, %v947
      %v954 = vadd.f32 %v715, %v949
      %955 = vmatprep.subr.bf16.mxu0 %v629
      %956 = vmatpush1.bf16.msra.mxu0 %v628
      %957 = vmatprep.subr.bf16.mxu0 %v627
      %958 = vmatpush1.bf16.msra.mxu0 %v626
      %959 = vmatprep.subr.bf16.mxu0 %v625
      %960 = vmatpush1.bf16.msra.mxu0 %v624
      %961 = vmatprep.subr.bf16.mxu0 %v623
      %962 = vmatpush1.bf16.msra.mxu0 %v622
      %963 = vmatprep.subr.bf16.mxu0 %v621
      %964 = vmatpush1.bf16.msra.mxu0 %v620
      %965 = vmatprep.subr.bf16.mxu0 %v619
      %966 = vmatpush1.bf16.msra.mxu0 %v618
      %967 = vmatprep.subr.bf16.mxu0 %v617
      %968 = vmatpush1.bf16.msra.mxu0 %v616
      %969 = vmatprep.subr.bf16.mxu0 %v615
      %970 = vmatpush1.bf16.msra.mxu0 %v614
      %971 = vmatprep.subr.bf16.mxu0 %v645
      %972 = vmatpush2.bf16.msra.mxu0 %v644
      %973 = vmatprep.subr.bf16.mxu0 %v643
      %974 = vmatpush2.bf16.msra.mxu0 %v642
      %975 = vmatprep.subr.bf16.mxu0 %v641
      %976 = vmatpush2.bf16.msra.mxu0 %v640
      %977 = vmatprep.subr.bf16.mxu0 %v639
      %978 = vmatpush2.bf16.msra.mxu0 %v638
      %979 = vmatprep.subr.bf16.mxu0 %v637
      %980 = vmatpush2.bf16.msra.mxu0 %v636
      %981 = vmatprep.subr.bf16.mxu0 %v635
      %982 = vmatpush2.bf16.msra.mxu0 %v634
      %983 = vmatprep.subr.bf16.mxu0 %v633
      %984 = vmatpush2.bf16.msra.mxu0 %v632
      %985 = vmatprep.subr.bf16.mxu0 %v631
      %986 = vmatpush2.bf16.msra.mxu0 %v630
      %987 = vmatprep.mubr.bf16.mxu0 %v224
      %988 = vmatmul.mubr.bf16.gmra.mxu0 %v223
      %v989 = vpop.f32.mrf.mxu0
      %v990 = vadd.f32 0.0, %v989
      %v991 = vpop.f32.mrf.mxu0
      %v992 = vadd.f32 0.0, %v991
      %v993 = vpop.f32.mrf.mxu0
      %v994 = vpop.f32.mrf.mxu0
      %995 = vdwg.mxu0
      %v996 = vadd.f32 %v953, %v990
      %v997 = vadd.f32 %v954, %v992
      %998 = vmatprep.subr.bf16.mxu0 %v428
      %999 = vmatpush1.bf16.msra.mxu0 %v427
      %1000 = vmatprep.subr.bf16.mxu0 %v426
      %1001 = vmatpush1.bf16.msra.mxu0 %v425
      %1002 = vmatprep.subr.bf16.mxu0 %v424
      %1003 = vmatpush1.bf16.msra.mxu0 %v423
      %1004 = vmatprep.subr.bf16.mxu0 %v422
      %1005 = vmatpush1.bf16.msra.mxu0 %v421
      %1006 = vmatprep.subr.bf16.mxu0 %v420
      %1007 = vmatpush1.bf16.msra.mxu0 %v419
      %1008 = vmatprep.subr.bf16.mxu0 %v418
      %1009 = vmatpush1.bf16.msra.mxu0 %v417
      %1010 = vmatprep.subr.bf16.mxu0 %v416
      %1011 = vmatpush1.bf16.msra.mxu0 %v415
      %1012 = vmatprep.subr.bf16.mxu0 %v414
      %1013 = vmatpush1.bf16.msra.mxu0 %v413
      %1014 = vmatprep.subr.bf16.mxu0 %v444
      %1015 = vmatpush2.bf16.msra.mxu0 %v443
      %1016 = vmatprep.subr.bf16.mxu0 %v442
      %1017 = vmatpush2.bf16.msra.mxu0 %v441
      %1018 = vmatprep.subr.bf16.mxu0 %v440
      %1019 = vmatpush2.bf16.msra.mxu0 %v439
      %1020 = vmatprep.subr.bf16.mxu0 %v438
      %1021 = vmatpush2.bf16.msra.mxu0 %v437
      %1022 = vmatprep.subr.bf16.mxu0 %v436
      %1023 = vmatpush2.bf16.msra.mxu0 %v435
      %1024 = vmatprep.subr.bf16.mxu0 %v434
      %1025 = vmatpush2.bf16.msra.mxu0 %v433
      %1026 = vmatprep.subr.bf16.mxu0 %v432
      %1027 = vmatpush2.bf16.msra.mxu0 %v431
      %1028 = vmatprep.subr.bf16.mxu0 %v430
      %1029 = vmatpush2.bf16.msra.mxu0 %v429
      %1030 = vmatprep.mubr.bf16.mxu0 %v224
      %1031 = vmatmul.mubr.bf16.gmra.mxu0 %v223
      %v1032 = vpop.f32.mrf.mxu0
      %v1033 = vadd.f32 0.0, %v1032
      %v1034 = vpop.f32.mrf.mxu0
      %v1035 = vadd.f32 0.0, %v1034
      %v1036 = vpop.f32.mrf.mxu0
      %v1037 = vpop.f32.mrf.mxu0
      %1038 = vdwg.mxu0
      %v1039 = vadd.f32 %v996, %v1033
      %v1040 = vadd.f32 %v997, %v1035
      %1041 = vmatprep.subr.bf16.mxu0 %v629
      %1042 = vmatpush1.bf16.msra.mxu0 %v628
      %1043 = vmatprep.subr.bf16.mxu0 %v627
      %1044 = vmatpush1.bf16.msra.mxu0 %v626
      %1045 = vmatprep.subr.bf16.mxu0 %v625
      %1046 = vmatpush1.bf16.msra.mxu0 %v624
      %1047 = vmatprep.subr.bf16.mxu0 %v623
      %1048 = vmatpush1.bf16.msra.mxu0 %v622
      %1049 = vmatprep.subr.bf16.mxu0 %v621
      %1050 = vmatpush1.bf16.msra.mxu0 %v620
      %1051 = vmatprep.subr.bf16.mxu0 %v619
      %1052 = vmatpush1.bf16.msra.mxu0 %v618
      %1053 = vmatprep.subr.bf16.mxu0 %v617
      %1054 = vmatpush1.bf16.msra.mxu0 %v616
      %1055 = vmatprep.subr.bf16.mxu0 %v615
      %1056 = vmatpush1.bf16.msra.mxu0 %v614
      %1057 = vmatprep.subr.bf16.mxu0 %v645
      %1058 = vmatpush2.bf16.msra.mxu0 %v644
      %1059 = vmatprep.subr.bf16.mxu0 %v643
      %1060 = vmatpush2.bf16.msra.mxu0 %v642
      %1061 = vmatprep.subr.bf16.mxu0 %v641
      %1062 = vmatpush2.bf16.msra.mxu0 %v640
      %1063 = vmatprep.subr.bf16.mxu0 %v639
      %1064 = vmatpush2.bf16.msra.mxu0 %v638
      %1065 = vmatprep.subr.bf16.mxu0 %v637
      %1066 = vmatpush2.bf16.msra.mxu0 %v636
      %1067 = vmatprep.subr.bf16.mxu0 %v635
      %1068 = vmatpush2.bf16.msra.mxu0 %v634
      %1069 = vmatprep.subr.bf16.mxu0 %v633
      %1070 = vmatpush2.bf16.msra.mxu0 %v632
      %1071 = vmatprep.subr.bf16.mxu0 %v631
      %1072 = vmatpush2.bf16.msra.mxu0 %v630
      %1073 = vmatprep.mubr.bf16.mxu0 %v251
      %1074 = vmatmul.mubr.bf16.gmra.mxu0 %v250
      %v1075 = vpop.f32.mrf.mxu0
      %v1076 = vadd.f32 0.0, %v1075
      %v1077 = vpop.f32.mrf.mxu0
      %v1078 = vadd.f32 0.0, %v1077
      %v1079 = vpop.f32.mrf.mxu0
      %v1080 = vpop.f32.mrf.mxu0
      %1081 = vdwg.mxu0
      %v1082 = vadd.f32 %v1039, %v1076
      %v1083 = vadd.f32 %v1040, %v1078
      %v1086 = vunpack.c.l.s4 1983009808
      %v1087 = vunpack.c.0.s8 %v1086
      %v1088 = vlaneseq
      %v1089 = vshrl.u32 %v1088, 7
      %v1090 = vsub.s32 %v1087, %v1089
      %v1091 = vrot.slane %v184, %v1090
      %v1092 = vcombine.high %v1091, %v1091
      %v1095 = vpack.c.bf16 %v1091, %v1091
      %v1096 = vpack.c.bf16 %v1092, %v1092
      %v1097 = vunpack.c.l.bf16 %v1095
      %v1098 = vunpack.c.l.bf16 %v1096
      %v1101 = vcombine.low %v1097, %v1098
      %v1103 = vunpack.c.l.s4 1983009808
      %v1104 = vunpack.c.0.s8 %v1103
      %v1105 = vlaneseq
      %v1106 = vshrl.u32 %v1105, 7
      %v1107 = vsub.s32 %v1104, %v1106
      %v1108 = vrot.slane %v1101, %v1107
      %v1110 = vsub.f32 %v184, %v1108
      %v1113 = vunpack.c.l.s4 1983009808
      %v1114 = vunpack.c.0.s8 %v1113
      %v1115 = vlaneseq
      %v1116 = vshrl.u32 %v1115, 7
      %v1117 = vsub.s32 %v1114, %v1116
      %v1118 = vrot.slane %v1110, %v1117
      %v1119 = vcombine.high %v1118, %v1118
      %v1122 = vpack.c.bf16 %v1118, %v1118
      %v1123 = vpack.c.bf16 %v1119, %v1119
      %v1124 = vunpack.c.l.bf16 %v1122
      %v1125 = vunpack.c.l.bf16 %v1123
      %v1128 = vcombine.low %v1124, %v1125
      %v1130 = vunpack.c.l.s4 1983009808
      %v1131 = vunpack.c.0.s8 %v1130
      %v1132 = vlaneseq
      %v1133 = vshrl.u32 %v1132, 7
      %v1134 = vsub.s32 %v1131, %v1133
      %v1135 = vrot.slane %v1128, %v1134
      %v1137 = vsub.f32 %v1110, %v1135
      %v1140 = vunpack.c.l.s4 1983009808
      %v1141 = vunpack.c.0.s8 %v1140
      %v1142 = vlaneseq
      %v1143 = vshrl.u32 %v1142, 7
      %v1144 = vsub.s32 %v1141, %v1143
      %v1145 = vrot.slane %v1137, %v1144
      %v1146 = vcombine.high %v1145, %v1145
      %v1149 = vpack.c.bf16 %v1145, %v1145
      %v1150 = vpack.c.bf16 %v1146, %v1146
      %s1151 = scalar_lea.vmem [#allocation4], 768
      %v1152 = vld [vmem:[%s1151] sm:$0xff]
      %v1153 = vld [vmem:[%s1151 + $0x8] sm:$0xff]
      %v1154 = vld [vmem:[%s1151 + $0x10] sm:$0xff]
      %v1155 = vld [vmem:[%s1151 + $0x18] sm:$0xff]
      %v1156 = vld [vmem:[%s1151 + $0x20] sm:$0xff]
      %v1157 = vld [vmem:[%s1151 + $0x28] sm:$0xff]
      %v1158 = vld [vmem:[%s1151 + $0x30] sm:$0xff]
      %v1159 = vld [vmem:[%s1151 + $0x38] sm:$0xff]
      %v1160 = vld [vmem:[%s1151 + $0x40] sm:$0xff]
      %v1161 = vld [vmem:[%s1151 + $0x48] sm:$0xff]
      %v1162 = vld [vmem:[%s1151 + $0x50] sm:$0xff]
      %v1163 = vld [vmem:[%s1151 + $0x58] sm:$0xff]
      %v1164 = vld [vmem:[%s1151 + $0x60] sm:$0xff]
      %v1165 = vld [vmem:[%s1151 + $0x68] sm:$0xff]
      %v1166 = vld [vmem:[%s1151 + $0x70] sm:$0xff]
      %v1167 = vld [vmem:[%s1151 + $0x78] sm:$0xff]
      %v1168 = vld [vmem:[%s1151 + $0x80] sm:$0xff]
      %v1169 = vld [vmem:[%s1151 + $0x88] sm:$0xff]
      %v1170 = vld [vmem:[%s1151 + $0x90] sm:$0xff]
      %v1171 = vld [vmem:[%s1151 + $0x98] sm:$0xff]
      %v1172 = vld [vmem:[%s1151 + $0xa0] sm:$0xff]
      %v1173 = vld [vmem:[%s1151 + $0xa8] sm:$0xff]
      %v1174 = vld [vmem:[%s1151 + $0xb0] sm:$0xff]
      %v1175 = vld [vmem:[%s1151 + $0xb8] sm:$0xff]
      %v1176 = vld [vmem:[%s1151 + $0xc0] sm:$0xff]
      %v1177 = vld [vmem:[%s1151 + $0xc8] sm:$0xff]
      %v1178 = vld [vmem:[%s1151 + $0xd0] sm:$0xff]
      %v1179 = vld [vmem:[%s1151 + $0xd8] sm:$0xff]
      %v1180 = vld [vmem:[%s1151 + $0xe0] sm:$0xff]
      %v1181 = vld [vmem:[%s1151 + $0xe8] sm:$0xff]
      %v1182 = vld [vmem:[%s1151 + $0xf0] sm:$0xff]
      %v1183 = vld [vmem:[%s1151 + $0xf8] sm:$0xff]
      %v1216 = vunpack.c.l.b16 %v1152
      %v1217 = vunpack.c.h.b16 %v1152
      %v1218 = vunpack.c.l.b16 %v1153
      %v1219 = vunpack.c.h.b16 %v1153
      %v1220 = vunpack.c.l.b16 %v1154
      %v1221 = vunpack.c.h.b16 %v1154
      %v1222 = vunpack.c.l.b16 %v1155
      %v1223 = vunpack.c.h.b16 %v1155
      %v1224 = vunpack.c.l.b16 %v1156
      %v1225 = vunpack.c.h.b16 %v1156
      %v1226 = vunpack.c.l.b16 %v1157
      %v1227 = vunpack.c.h.b16 %v1157
      %v1228 = vunpack.c.l.b16 %v1158
      %v1229 = vunpack.c.h.b16 %v1158
      %v1230 = vunpack.c.l.b16 %v1159
      %v1231 = vunpack.c.h.b16 %v1159
      %v1232 = vunpack.c.l.b16 %v1160
      %v1233 = vunpack.c.h.b16 %v1160
      %v1234 = vunpack.c.l.b16 %v1161
      %v1235 = vunpack.c.h.b16 %v1161
      %v1236 = vunpack.c.l.b16 %v1162
      %v1237 = vunpack.c.h.b16 %v1162
      %v1238 = vunpack.c.l.b16 %v1163
      %v1239 = vunpack.c.h.b16 %v1163
      %v1240 = vunpack.c.l.b16 %v1164
      %v1241 = vunpack.c.h.b16 %v1164
      %v1242 = vunpack.c.l.b16 %v1165
      %v1243 = vunpack.c.h.b16 %v1165
      %v1244 = vunpack.c.l.b16 %v1166
      %v1245 = vunpack.c.h.b16 %v1166
      %v1246 = vunpack.c.l.b16 %v1167
      %v1247 = vunpack.c.h.b16 %v1167
      %v1248 = vunpack.c.l.b16 %v1168
      %v1249 = vunpack.c.h.b16 %v1168
      %v1250 = vunpack.c.l.b16 %v1169
      %v1251 = vunpack.c.h.b16 %v1169
      %v1252 = vunpack.c.l.b16 %v1170
      %v1253 = vunpack.c.h.b16 %v1170
      %v1254 = vunpack.c.l.b16 %v1171
      %v1255 = vunpack.c.h.b16 %v1171
      %v1256 = vunpack.c.l.b16 %v1172
      %v1257 = vunpack.c.h.b16 %v1172
      %v1258 = vunpack.c.l.b16 %v1173
      %v1259 = vunpack.c.h.b16 %v1173
      %v1260 = vunpack.c.l.b16 %v1174
      %v1261 = vunpack.c.h.b16 %v1174
      %v1262 = vunpack.c.l.b16 %v1175
      %v1263 = vunpack.c.h.b16 %v1175
      %v1264 = vunpack.c.l.b16 %v1176
      %v1265 = vunpack.c.h.b16 %v1176
      %v1266 = vunpack.c.l.b16 %v1177
      %v1267 = vunpack.c.h.b16 %v1177
      %v1268 = vunpack.c.l.b16 %v1178
      %v1269 = vunpack.c.h.b16 %v1178
      %v1270 = vunpack.c.l.b16 %v1179
      %v1271 = vunpack.c.h.b16 %v1179
      %v1272 = vunpack.c.l.b16 %v1180
      %v1273 = vunpack.c.h.b16 %v1180
      %v1274 = vunpack.c.l.b16 %v1181
      %v1275 = vunpack.c.h.b16 %v1181
      %v1276 = vunpack.c.l.b16 %v1182
      %v1277 = vunpack.c.h.b16 %v1182
      %v1278 = vunpack.c.l.b16 %v1183
      %v1279 = vunpack.c.h.b16 %v1183
      %v1280 = vpack.c.b16 %v1218, %v1216
      %v1281 = vpack.c.b16 %v1219, %v1217
      %v1282 = vpack.c.b16 %v1222, %v1220
      %v1283 = vpack.c.b16 %v1223, %v1221
      %v1284 = vpack.c.b16 %v1226, %v1224
      %v1285 = vpack.c.b16 %v1227, %v1225
      %v1286 = vpack.c.b16 %v1230, %v1228
      %v1287 = vpack.c.b16 %v1231, %v1229
      %v1288 = vpack.c.b16 %v1234, %v1232
      %v1289 = vpack.c.b16 %v1235, %v1233
      %v1290 = vpack.c.b16 %v1238, %v1236
      %v1291 = vpack.c.b16 %v1239, %v1237
      %v1292 = vpack.c.b16 %v1242, %v1240
      %v1293 = vpack.c.b16 %v1243, %v1241
      %v1294 = vpack.c.b16 %v1246, %v1244
      %v1295 = vpack.c.b16 %v1247, %v1245
      %v1296 = vpack.c.b16 %v1250, %v1248
      %v1297 = vpack.c.b16 %v1251, %v1249
      %v1298 = vpack.c.b16 %v1254, %v1252
      %v1299 = vpack.c.b16 %v1255, %v1253
      %v1300 = vpack.c.b16 %v1258, %v1256
      %v1301 = vpack.c.b16 %v1259, %v1257
      %v1302 = vpack.c.b16 %v1262, %v1260
      %v1303 = vpack.c.b16 %v1263, %v1261
      %v1304 = vpack.c.b16 %v1266, %v1264
      %v1305 = vpack.c.b16 %v1267, %v1265
      %v1306 = vpack.c.b16 %v1270, %v1268
      %v1307 = vpack.c.b16 %v1271, %v1269
      %v1308 = vpack.c.b16 %v1274, %v1272
      %v1309 = vpack.c.b16 %v1275, %v1273
      %v1310 = vpack.c.b16 %v1278, %v1276
      %v1311 = vpack.c.b16 %v1279, %v1277
      %1344 = vmatprep.subr.bf16.mxu0 %v1295
      %1345 = vmatpush1.bf16.msra.mxu0 %v1294
      %1346 = vmatprep.subr.bf16.mxu0 %v1293
      %1347 = vmatpush1.bf16.msra.mxu0 %v1292
      %1348 = vmatprep.subr.bf16.mxu0 %v1291
      %1349 = vmatpush1.bf16.msra.mxu0 %v1290
      %1350 = vmatprep.subr.bf16.mxu0 %v1289
      %1351 = vmatpush1.bf16.msra.mxu0 %v1288
      %1352 = vmatprep.subr.bf16.mxu0 %v1287
      %1353 = vmatpush1.bf16.msra.mxu0 %v1286
      %1354 = vmatprep.subr.bf16.mxu0 %v1285
      %1355 = vmatpush1.bf16.msra.mxu0 %v1284
      %1356 = vmatprep.subr.bf16.mxu0 %v1283
      %1357 = vmatpush1.bf16.msra.mxu0 %v1282
      %1358 = vmatprep.subr.bf16.mxu0 %v1281
      %1359 = vmatpush1.bf16.msra.mxu0 %v1280
      %1360 = vmatprep.subr.bf16.mxu0 %v1311
      %1361 = vmatpush2.bf16.msra.mxu0 %v1310
      %1362 = vmatprep.subr.bf16.mxu0 %v1309
      %1363 = vmatpush2.bf16.msra.mxu0 %v1308
      %1364 = vmatprep.subr.bf16.mxu0 %v1307
      %1365 = vmatpush2.bf16.msra.mxu0 %v1306
      %1366 = vmatprep.subr.bf16.mxu0 %v1305
      %1367 = vmatpush2.bf16.msra.mxu0 %v1304
      %1368 = vmatprep.subr.bf16.mxu0 %v1303
      %1369 = vmatpush2.bf16.msra.mxu0 %v1302
      %1370 = vmatprep.subr.bf16.mxu0 %v1301
      %1371 = vmatpush2.bf16.msra.mxu0 %v1300
      %1372 = vmatprep.subr.bf16.mxu0 %v1299
      %1373 = vmatpush2.bf16.msra.mxu0 %v1298
      %1374 = vmatprep.subr.bf16.mxu0 %v1297
      %1375 = vmatpush2.bf16.msra.mxu0 %v1296
      %1376 = vmatprep.mubr.bf16.mxu0 %v1096
      %1377 = vmatmul.mubr.bf16.gmra.mxu0 %v1095
      %v1378 = vpop.f32.mrf.mxu0
      %v1379 = vadd.f32 0.0, %v1378
      %v1380 = vpop.f32.mrf.mxu0
      %v1381 = vadd.f32 0.0, %v1380
      %v1382 = vpop.f32.mrf.mxu0
      %v1383 = vpop.f32.mrf.mxu0
      %1384 = vdwg.mxu0
      %v1385 = vadd.f32 %v1082, %v1379
      %v1386 = vadd.f32 %v1083, %v1381
      %s1387 = scalar_lea.vmem [#allocation4], 1024
      %v1388 = vld [vmem:[%s1387] sm:$0xff]
      %v1389 = vld [vmem:[%s1387 + $0x8] sm:$0xff]
      %v1390 = vld [vmem:[%s1387 + $0x10] sm:$0xff]
      %v1391 = vld [vmem:[%s1387 + $0x18] sm:$0xff]
      %v1392 = vld [vmem:[%s1387 + $0x20] sm:$0xff]
      %v1393 = vld [vmem:[%s1387 + $0x28] sm:$0xff]
      %v1394 = vld [vmem:[%s1387 + $0x30] sm:$0xff]
      %v1395 = vld [vmem:[%s1387 + $0x38] sm:$0xff]
      %v1396 = vld [vmem:[%s1387 + $0x40] sm:$0xff]
      %v1397 = vld [vmem:[%s1387 + $0x48] sm:$0xff]
      %v1398 = vld [vmem:[%s1387 + $0x50] sm:$0xff]
      %v1399 = vld [vmem:[%s1387 + $0x58] sm:$0xff]
      %v1400 = vld [vmem:[%s1387 + $0x60] sm:$0xff]
      %v1401 = vld [vmem:[%s1387 + $0x68] sm:$0xff]
      %v1402 = vld [vmem:[%s1387 + $0x70] sm:$0xff]
      %v1403 = vld [vmem:[%s1387 + $0x78] sm:$0xff]
      %v1404 = vld [vmem:[%s1387 + $0x80] sm:$0xff]
      %v1405 = vld [vmem:[%s1387 + $0x88] sm:$0xff]
      %v1406 = vld [vmem:[%s1387 + $0x90] sm:$0xff]
      %v1407 = vld [vmem:[%s1387 + $0x98] sm:$0xff]
      %v1408 = vld [vmem:[%s1387 + $0xa0] sm:$0xff]
      %v1409 = vld [vmem:[%s1387 + $0xa8] sm:$0xff]
      %v1410 = vld [vmem:[%s1387 + $0xb0] sm:$0xff]
      %v1411 = vld [vmem:[%s1387 + $0xb8] sm:$0xff]
      %v1412 = vld [vmem:[%s1387 + $0xc0] sm:$0xff]
      %v1413 = vld [vmem:[%s1387 + $0xc8] sm:$0xff]
      %v1414 = vld [vmem:[%s1387 + $0xd0] sm:$0xff]
      %v1415 = vld [vmem:[%s1387 + $0xd8] sm:$0xff]
      %v1416 = vld [vmem:[%s1387 + $0xe0] sm:$0xff]
      %v1417 = vld [vmem:[%s1387 + $0xe8] sm:$0xff]
      %v1418 = vld [vmem:[%s1387 + $0xf0] sm:$0xff]
      %v1419 = vld [vmem:[%s1387 + $0xf8] sm:$0xff]
      %v1452 = vunpack.c.l.b16 %v1388
      %v1453 = vunpack.c.h.b16 %v1388
      %v1454 = vunpack.c.l.b16 %v1389
      %v1455 = vunpack.c.h.b16 %v1389
      %v1456 = vunpack.c.l.b16 %v1390
      %v1457 = vunpack.c.h.b16 %v1390
      %v1458 = vunpack.c.l.b16 %v1391
      %v1459 = vunpack.c.h.b16 %v1391
      %v1460 = vunpack.c.l.b16 %v1392
      %v1461 = vunpack.c.h.b16 %v1392
      %v1462 = vunpack.c.l.b16 %v1393
      %v1463 = vunpack.c.h.b16 %v1393
      %v1464 = vunpack.c.l.b16 %v1394
      %v1465 = vunpack.c.h.b16 %v1394
      %v1466 = vunpack.c.l.b16 %v1395
      %v1467 = vunpack.c.h.b16 %v1395
      %v1468 = vunpack.c.l.b16 %v1396
      %v1469 = vunpack.c.h.b16 %v1396
      %v1470 = vunpack.c.l.b16 %v1397
      %v1471 = vunpack.c.h.b16 %v1397
      %v1472 = vunpack.c.l.b16 %v1398
      %v1473 = vunpack.c.h.b16 %v1398
      %v1474 = vunpack.c.l.b16 %v1399
      %v1475 = vunpack.c.h.b16 %v1399
      %v1476 = vunpack.c.l.b16 %v1400
      %v1477 = vunpack.c.h.b16 %v1400
      %v1478 = vunpack.c.l.b16 %v1401
      %v1479 = vunpack.c.h.b16 %v1401
      %v1480 = vunpack.c.l.b16 %v1402
      %v1481 = vunpack.c.h.b16 %v1402
      %v1482 = vunpack.c.l.b16 %v1403
      %v1483 = vunpack.c.h.b16 %v1403
      %v1484 = vunpack.c.l.b16 %v1404
      %v1485 = vunpack.c.h.b16 %v1404
      %v1486 = vunpack.c.l.b16 %v1405
      %v1487 = vunpack.c.h.b16 %v1405
      %v1488 = vunpack.c.l.b16 %v1406
      %v1489 = vunpack.c.h.b16 %v1406
      %v1490 = vunpack.c.l.b16 %v1407
      %v1491 = vunpack.c.h.b16 %v1407
      %v1492 = vunpack.c.l.b16 %v1408
      %v1493 = vunpack.c.h.b16 %v1408
      %v1494 = vunpack.c.l.b16 %v1409
      %v1495 = vunpack.c.h.b16 %v1409
      %v1496 = vunpack.c.l.b16 %v1410
      %v1497 = vunpack.c.h.b16 %v1410
      %v1498 = vunpack.c.l.b16 %v1411
      %v1499 = vunpack.c.h.b16 %v1411
      %v1500 = vunpack.c.l.b16 %v1412
      %v1501 = vunpack.c.h.b16 %v1412
      %v1502 = vunpack.c.l.b16 %v1413
      %v1503 = vunpack.c.h.b16 %v1413
      %v1504 = vunpack.c.l.b16 %v1414
      %v1505 = vunpack.c.h.b16 %v1414
      %v1506 = vunpack.c.l.b16 %v1415
      %v1507 = vunpack.c.h.b16 %v1415
      %v1508 = vunpack.c.l.b16 %v1416
      %v1509 = vunpack.c.h.b16 %v1416
      %v1510 = vunpack.c.l.b16 %v1417
      %v1511 = vunpack.c.h.b16 %v1417
      %v1512 = vunpack.c.l.b16 %v1418
      %v1513 = vunpack.c.h.b16 %v1418
      %v1514 = vunpack.c.l.b16 %v1419
      %v1515 = vunpack.c.h.b16 %v1419
      %v1516 = vpack.c.b16 %v1454, %v1452
      %v1517 = vpack.c.b16 %v1455, %v1453
      %v1518 = vpack.c.b16 %v1458, %v1456
      %v1519 = vpack.c.b16 %v1459, %v1457
      %v1520 = vpack.c.b16 %v1462, %v1460
      %v1521 = vpack.c.b16 %v1463, %v1461
      %v1522 = vpack.c.b16 %v1466, %v1464
      %v1523 = vpack.c.b16 %v1467, %v1465
      %v1524 = vpack.c.b16 %v1470, %v1468
      %v1525 = vpack.c.b16 %v1471, %v1469
      %v1526 = vpack.c.b16 %v1474, %v1472
      %v1527 = vpack.c.b16 %v1475, %v1473
      %v1528 = vpack.c.b16 %v1478, %v1476
      %v1529 = vpack.c.b16 %v1479, %v1477
      %v1530 = vpack.c.b16 %v1482, %v1480
      %v1531 = vpack.c.b16 %v1483, %v1481
      %v1532 = vpack.c.b16 %v1486, %v1484
      %v1533 = vpack.c.b16 %v1487, %v1485
      %v1534 = vpack.c.b16 %v1490, %v1488
      %v1535 = vpack.c.b16 %v1491, %v1489
      %v1536 = vpack.c.b16 %v1494, %v1492
      %v1537 = vpack.c.b16 %v1495, %v1493
      %v1538 = vpack.c.b16 %v1498, %v1496
      %v1539 = vpack.c.b16 %v1499, %v1497
      %v1540 = vpack.c.b16 %v1502, %v1500
      %v1541 = vpack.c.b16 %v1503, %v1501
      %v1542 = vpack.c.b16 %v1506, %v1504
      %v1543 = vpack.c.b16 %v1507, %v1505
      %v1544 = vpack.c.b16 %v1510, %v1508
      %v1545 = vpack.c.b16 %v1511, %v1509
      %v1546 = vpack.c.b16 %v1514, %v1512
      %v1547 = vpack.c.b16 %v1515, %v1513
      %1580 = vmatprep.subr.bf16.mxu0 %v1531
      %1581 = vmatpush1.bf16.msra.mxu0 %v1530
      %1582 = vmatprep.subr.bf16.mxu0 %v1529
      %1583 = vmatpush1.bf16.msra.mxu0 %v1528
      %1584 = vmatprep.subr.bf16.mxu0 %v1527
      %1585 = vmatpush1.bf16.msra.mxu0 %v1526
      %1586 = vmatprep.subr.bf16.mxu0 %v1525
      %1587 = vmatpush1.bf16.msra.mxu0 %v1524
      %1588 = vmatprep.subr.bf16.mxu0 %v1523
      %1589 = vmatpush1.bf16.msra.mxu0 %v1522
      %1590 = vmatprep.subr.bf16.mxu0 %v1521
      %1591 = vmatpush1.bf16.msra.mxu0 %v1520
      %1592 = vmatprep.subr.bf16.mxu0 %v1519
      %1593 = vmatpush1.bf16.msra.mxu0 %v1518
      %1594 = vmatprep.subr.bf16.mxu0 %v1517
      %1595 = vmatpush1.bf16.msra.mxu0 %v1516
      %1596 = vmatprep.subr.bf16.mxu0 %v1547
      %1597 = vmatpush2.bf16.msra.mxu0 %v1546
      %1598 = vmatprep.subr.bf16.mxu0 %v1545
      %1599 = vmatpush2.bf16.msra.mxu0 %v1544
      %1600 = vmatprep.subr.bf16.mxu0 %v1543
      %1601 = vmatpush2.bf16.msra.mxu0 %v1542
      %1602 = vmatprep.subr.bf16.mxu0 %v1541
      %1603 = vmatpush2.bf16.msra.mxu0 %v1540
      %1604 = vmatprep.subr.bf16.mxu0 %v1539
      %1605 = vmatpush2.bf16.msra.mxu0 %v1538
      %1606 = vmatprep.subr.bf16.mxu0 %v1537
      %1607 = vmatpush2.bf16.msra.mxu0 %v1536
      %1608 = vmatprep.subr.bf16.mxu0 %v1535
      %1609 = vmatpush2.bf16.msra.mxu0 %v1534
      %1610 = vmatprep.subr.bf16.mxu0 %v1533
      %1611 = vmatpush2.bf16.msra.mxu0 %v1532
      %1612 = vmatprep.mubr.bf16.mxu0 %v1096
      %1613 = vmatmul.mubr.bf16.gmra.mxu0 %v1095
      %v1614 = vpop.f32.mrf.mxu0
      %v1615 = vadd.f32 0.0, %v1614
      %v1616 = vpop.f32.mrf.mxu0
      %v1617 = vadd.f32 0.0, %v1616
      %v1618 = vpop.f32.mrf.mxu0
      %v1619 = vpop.f32.mrf.mxu0
      %1620 = vdwg.mxu0
      %v1621 = vadd.f32 %v1385, %v1615
      %v1622 = vadd.f32 %v1386, %v1617
      %s1623 = scalar_lea.vmem [#allocation4], 1280
      %v1624 = vld [vmem:[%s1623] sm:$0xff]
      %v1625 = vld [vmem:[%s1623 + $0x8] sm:$0xff]
      %v1626 = vld [vmem:[%s1623 + $0x10] sm:$0xff]
      %v1627 = vld [vmem:[%s1623 + $0x18] sm:$0xff]
      %v1628 = vld [vmem:[%s1623 + $0x20] sm:$0xff]
      %v1629 = vld [vmem:[%s1623 + $0x28] sm:$0xff]
      %v1630 = vld [vmem:[%s1623 + $0x30] sm:$0xff]
      %v1631 = vld [vmem:[%s1623 + $0x38] sm:$0xff]
      %v1632 = vld [vmem:[%s1623 + $0x40] sm:$0xff]
      %v1633 = vld [vmem:[%s1623 + $0x48] sm:$0xff]
      %v1634 = vld [vmem:[%s1623 + $0x50] sm:$0xff]
      %v1635 = vld [vmem:[%s1623 + $0x58] sm:$0xff]
      %v1636 = vld [vmem:[%s1623 + $0x60] sm:$0xff]
      %v1637 = vld [vmem:[%s1623 + $0x68] sm:$0xff]
      %v1638 = vld [vmem:[%s1623 + $0x70] sm:$0xff]
      %v1639 = vld [vmem:[%s1623 + $0x78] sm:$0xff]
      %v1640 = vld [vmem:[%s1623 + $0x80] sm:$0xff]
      %v1641 = vld [vmem:[%s1623 + $0x88] sm:$0xff]
      %v1642 = vld [vmem:[%s1623 + $0x90] sm:$0xff]
      %v1643 = vld [vmem:[%s1623 + $0x98] sm:$0xff]
      %v1644 = vld [vmem:[%s1623 + $0xa0] sm:$0xff]
      %v1645 = vld [vmem:[%s1623 + $0xa8] sm:$0xff]
      %v1646 = vld [vmem:[%s1623 + $0xb0] sm:$0xff]
      %v1647 = vld [vmem:[%s1623 + $0xb8] sm:$0xff]
      %v1648 = vld [vmem:[%s1623 + $0xc0] sm:$0xff]
      %v1649 = vld [vmem:[%s1623 + $0xc8] sm:$0xff]
      %v1650 = vld [vmem:[%s1623 + $0xd0] sm:$0xff]
      %v1651 = vld [vmem:[%s1623 + $0xd8] sm:$0xff]
      %v1652 = vld [vmem:[%s1623 + $0xe0] sm:$0xff]
      %v1653 = vld [vmem:[%s1623 + $0xe8] sm:$0xff]
      %v1654 = vld [vmem:[%s1623 + $0xf0] sm:$0xff]
      %v1655 = vld [vmem:[%s1623 + $0xf8] sm:$0xff]
      %v1688 = vunpack.c.l.b16 %v1624
      %v1689 = vunpack.c.h.b16 %v1624
      %v1690 = vunpack.c.l.b16 %v1625
      %v1691 = vunpack.c.h.b16 %v1625
      %v1692 = vunpack.c.l.b16 %v1626
      %v1693 = vunpack.c.h.b16 %v1626
      %v1694 = vunpack.c.l.b16 %v1627
      %v1695 = vunpack.c.h.b16 %v1627
      %v1696 = vunpack.c.l.b16 %v1628
      %v1697 = vunpack.c.h.b16 %v1628
      %v1698 = vunpack.c.l.b16 %v1629
      %v1699 = vunpack.c.h.b16 %v1629
      %v1700 = vunpack.c.l.b16 %v1630
      %v1701 = vunpack.c.h.b16 %v1630
      %v1702 = vunpack.c.l.b16 %v1631
      %v1703 = vunpack.c.h.b16 %v1631
      %v1704 = vunpack.c.l.b16 %v1632
      %v1705 = vunpack.c.h.b16 %v1632
      %v1706 = vunpack.c.l.b16 %v1633
      %v1707 = vunpack.c.h.b16 %v1633
      %v1708 = vunpack.c.l.b16 %v1634
      %v1709 = vunpack.c.h.b16 %v1634
      %v1710 = vunpack.c.l.b16 %v1635
      %v1711 = vunpack.c.h.b16 %v1635
      %v1712 = vunpack.c.l.b16 %v1636
      %v1713 = vunpack.c.h.b16 %v1636
      %v1714 = vunpack.c.l.b16 %v1637
      %v1715 = vunpack.c.h.b16 %v1637
      %v1716 = vunpack.c.l.b16 %v1638
      %v1717 = vunpack.c.h.b16 %v1638
      %v1718 = vunpack.c.l.b16 %v1639
      %v1719 = vunpack.c.h.b16 %v1639
      %v1720 = vunpack.c.l.b16 %v1640
      %v1721 = vunpack.c.h.b16 %v1640
      %v1722 = vunpack.c.l.b16 %v1641
      %v1723 = vunpack.c.h.b16 %v1641
      %v1724 = vunpack.c.l.b16 %v1642
      %v1725 = vunpack.c.h.b16 %v1642
      %v1726 = vunpack.c.l.b16 %v1643
      %v1727 = vunpack.c.h.b16 %v1643
      %v1728 = vunpack.c.l.b16 %v1644
      %v1729 = vunpack.c.h.b16 %v1644
      %v1730 = vunpack.c.l.b16 %v1645
      %v1731 = vunpack.c.h.b16 %v1645
      %v1732 = vunpack.c.l.b16 %v1646
      %v1733 = vunpack.c.h.b16 %v1646
      %v1734 = vunpack.c.l.b16 %v1647
      %v1735 = vunpack.c.h.b16 %v1647
      %v1736 = vunpack.c.l.b16 %v1648
      %v1737 = vunpack.c.h.b16 %v1648
      %v1738 = vunpack.c.l.b16 %v1649
      %v1739 = vunpack.c.h.b16 %v1649
      %v1740 = vunpack.c.l.b16 %v1650
      %v1741 = vunpack.c.h.b16 %v1650
      %v1742 = vunpack.c.l.b16 %v1651
      %v1743 = vunpack.c.h.b16 %v1651
      %v1744 = vunpack.c.l.b16 %v1652
      %v1745 = vunpack.c.h.b16 %v1652
      %v1746 = vunpack.c.l.b16 %v1653
      %v1747 = vunpack.c.h.b16 %v1653
      %v1748 = vunpack.c.l.b16 %v1654
      %v1749 = vunpack.c.h.b16 %v1654
      %v1750 = vunpack.c.l.b16 %v1655
      %v1751 = vunpack.c.h.b16 %v1655
      %v1752 = vpack.c.b16 %v1690, %v1688
      %v1753 = vpack.c.b16 %v1691, %v1689
      %v1754 = vpack.c.b16 %v1694, %v1692
      %v1755 = vpack.c.b16 %v1695, %v1693
      %v1756 = vpack.c.b16 %v1698, %v1696
      %v1757 = vpack.c.b16 %v1699, %v1697
      %v1758 = vpack.c.b16 %v1702, %v1700
      %v1759 = vpack.c.b16 %v1703, %v1701
      %v1760 = vpack.c.b16 %v1706, %v1704
      %v1761 = vpack.c.b16 %v1707, %v1705
      %v1762 = vpack.c.b16 %v1710, %v1708
      %v1763 = vpack.c.b16 %v1711, %v1709
      %v1764 = vpack.c.b16 %v1714, %v1712
      %v1765 = vpack.c.b16 %v1715, %v1713
      %v1766 = vpack.c.b16 %v1718, %v1716
      %v1767 = vpack.c.b16 %v1719, %v1717
      %v1768 = vpack.c.b16 %v1722, %v1720
      %v1769 = vpack.c.b16 %v1723, %v1721
      %v1770 = vpack.c.b16 %v1726, %v1724
      %v1771 = vpack.c.b16 %v1727, %v1725
      %v1772 = vpack.c.b16 %v1730, %v1728
      %v1773 = vpack.c.b16 %v1731, %v1729
      %v1774 = vpack.c.b16 %v1734, %v1732
      %v1775 = vpack.c.b16 %v1735, %v1733
      %v1776 = vpack.c.b16 %v1738, %v1736
      %v1777 = vpack.c.b16 %v1739, %v1737
      %v1778 = vpack.c.b16 %v1742, %v1740
      %v1779 = vpack.c.b16 %v1743, %v1741
      %v1780 = vpack.c.b16 %v1746, %v1744
      %v1781 = vpack.c.b16 %v1747, %v1745
      %v1782 = vpack.c.b16 %v1750, %v1748
      %v1783 = vpack.c.b16 %v1751, %v1749
      %1816 = vmatprep.subr.bf16.mxu0 %v1767
      %1817 = vmatpush1.bf16.msra.mxu0 %v1766
      %1818 = vmatprep.subr.bf16.mxu0 %v1765
      %1819 = vmatpush1.bf16.msra.mxu0 %v1764
      %1820 = vmatprep.subr.bf16.mxu0 %v1763
      %1821 = vmatpush1.bf16.msra.mxu0 %v1762
      %1822 = vmatprep.subr.bf16.mxu0 %v1761
      %1823 = vmatpush1.bf16.msra.mxu0 %v1760
      %1824 = vmatprep.subr.bf16.mxu0 %v1759
      %1825 = vmatpush1.bf16.msra.mxu0 %v1758
      %1826 = vmatprep.subr.bf16.mxu0 %v1757
      %1827 = vmatpush1.bf16.msra.mxu0 %v1756
      %1828 = vmatprep.subr.bf16.mxu0 %v1755
      %1829 = vmatpush1.bf16.msra.mxu0 %v1754
      %1830 = vmatprep.subr.bf16.mxu0 %v1753
      %1831 = vmatpush1.bf16.msra.mxu0 %v1752
      %1832 = vmatprep.subr.bf16.mxu0 %v1783
      %1833 = vmatpush2.bf16.msra.mxu0 %v1782
      %1834 = vmatprep.subr.bf16.mxu0 %v1781
      %1835 = vmatpush2.bf16.msra.mxu0 %v1780
      %1836 = vmatprep.subr.bf16.mxu0 %v1779
      %1837 = vmatpush2.bf16.msra.mxu0 %v1778
      %1838 = vmatprep.subr.bf16.mxu0 %v1777
      %1839 = vmatpush2.bf16.msra.mxu0 %v1776
      %1840 = vmatprep.subr.bf16.mxu0 %v1775
      %1841 = vmatpush2.bf16.msra.mxu0 %v1774
      %1842 = vmatprep.subr.bf16.mxu0 %v1773
      %1843 = vmatpush2.bf16.msra.mxu0 %v1772
      %1844 = vmatprep.subr.bf16.mxu0 %v1771
      %1845 = vmatpush2.bf16.msra.mxu0 %v1770
      %1846 = vmatprep.subr.bf16.mxu0 %v1769
      %1847 = vmatpush2.bf16.msra.mxu0 %v1768
      %1848 = vmatprep.mubr.bf16.mxu0 %v1096
      %1849 = vmatmul.mubr.bf16.gmra.mxu0 %v1095
      %v1850 = vpop.f32.mrf.mxu0
      %v1851 = vadd.f32 0.0, %v1850
      %v1852 = vpop.f32.mrf.mxu0
      %v1853 = vadd.f32 0.0, %v1852
      %v1854 = vpop.f32.mrf.mxu0
      %v1855 = vpop.f32.mrf.mxu0
      %1856 = vdwg.mxu0
      %v1857 = vadd.f32 %v1621, %v1851
      %v1858 = vadd.f32 %v1622, %v1853
      %1859 = vmatprep.subr.bf16.mxu0 %v1295
      %1860 = vmatpush1.bf16.msra.mxu0 %v1294
      %1861 = vmatprep.subr.bf16.mxu0 %v1293
      %1862 = vmatpush1.bf16.msra.mxu0 %v1292
      %1863 = vmatprep.subr.bf16.mxu0 %v1291
      %1864 = vmatpush1.bf16.msra.mxu0 %v1290
      %1865 = vmatprep.subr.bf16.mxu0 %v1289
      %1866 = vmatpush1.bf16.msra.mxu0 %v1288
      %1867 = vmatprep.subr.bf16.mxu0 %v1287
      %1868 = vmatpush1.bf16.msra.mxu0 %v1286
      %1869 = vmatprep.subr.bf16.mxu0 %v1285
      %1870 = vmatpush1.bf16.msra.mxu0 %v1284
      %1871 = vmatprep.subr.bf16.mxu0 %v1283
      %1872 = vmatpush1.bf16.msra.mxu0 %v1282
      %1873 = vmatprep.subr.bf16.mxu0 %v1281
      %1874 = vmatpush1.bf16.msra.mxu0 %v1280
      %1875 = vmatprep.subr.bf16.mxu0 %v1311
      %1876 = vmatpush2.bf16.msra.mxu0 %v1310
      %1877 = vmatprep.subr.bf16.mxu0 %v1309
      %1878 = vmatpush2.bf16.msra.mxu0 %v1308
      %1879 = vmatprep.subr.bf16.mxu0 %v1307
      %1880 = vmatpush2.bf16.msra.mxu0 %v1306
      %1881 = vmatprep.subr.bf16.mxu0 %v1305
      %1882 = vmatpush2.bf16.msra.mxu0 %v1304
      %1883 = vmatprep.subr.bf16.mxu0 %v1303
      %1884 = vmatpush2.bf16.msra.mxu0 %v1302
      %1885 = vmatprep.subr.bf16.mxu0 %v1301
      %1886 = vmatpush2.bf16.msra.mxu0 %v1300
      %1887 = vmatprep.subr.bf16.mxu0 %v1299
      %1888 = vmatpush2.bf16.msra.mxu0 %v1298
      %1889 = vmatprep.subr.bf16.mxu0 %v1297
      %1890 = vmatpush2.bf16.msra.mxu0 %v1296
      %1891 = vmatprep.mubr.bf16.mxu0 %v1123
      %1892 = vmatmul.mubr.bf16.gmra.mxu0 %v1122
      %v1893 = vpop.f32.mrf.mxu0
      %v1894 = vadd.f32 0.0, %v1893
      %v1895 = vpop.f32.mrf.mxu0
      %v1896 = vadd.f32 0.0, %v1895
      %v1897 = vpop.f32.mrf.mxu0
      %v1898 = vpop.f32.mrf.mxu0
      %1899 = vdwg.mxu0
      %v1900 = vadd.f32 %v1857, %v1894
      %v1901 = vadd.f32 %v1858, %v1896
      %1902 = vmatprep.subr.bf16.mxu0 %v1531
      %1903 = vmatpush1.bf16.msra.mxu0 %v1530
      %1904 = vmatprep.subr.bf16.mxu0 %v1529
      %1905 = vmatpush1.bf16.msra.mxu0 %v1528
      %1906 = vmatprep.subr.bf16.mxu0 %v1527
      %1907 = vmatpush1.bf16.msra.mxu0 %v1526
      %1908 = vmatprep.subr.bf16.mxu0 %v1525
      %1909 = vmatpush1.bf16.msra.mxu0 %v1524
      %1910 = vmatprep.subr.bf16.mxu0 %v1523
      %1911 = vmatpush1.bf16.msra.mxu0 %v1522
      %1912 = vmatprep.subr.bf16.mxu0 %v1521
      %1913 = vmatpush1.bf16.msra.mxu0 %v1520
      %1914 = vmatprep.subr.bf16.mxu0 %v1519
      %1915 = vmatpush1.bf16.msra.mxu0 %v1518
      %1916 = vmatprep.subr.bf16.mxu0 %v1517
      %1917 = vmatpush1.bf16.msra.mxu0 %v1516
      %1918 = vmatprep.subr.bf16.mxu0 %v1547
      %1919 = vmatpush2.bf16.msra.mxu0 %v1546
      %1920 = vmatprep.subr.bf16.mxu0 %v1545
      %1921 = vmatpush2.bf16.msra.mxu0 %v1544
      %1922 = vmatprep.subr.bf16.mxu0 %v1543
      %1923 = vmatpush2.bf16.msra.mxu0 %v1542
      %1924 = vmatprep.subr.bf16.mxu0 %v1541
      %1925 = vmatpush2.bf16.msra.mxu0 %v1540
      %1926 = vmatprep.subr.bf16.mxu0 %v1539
      %1927 = vmatpush2.bf16.msra.mxu0 %v1538
      %1928 = vmatprep.subr.bf16.mxu0 %v1537
      %1929 = vmatpush2.bf16.msra.mxu0 %v1536
      %1930 = vmatprep.subr.bf16.mxu0 %v1535
      %1931 = vmatpush2.bf16.msra.mxu0 %v1534
      %1932 = vmatprep.subr.bf16.mxu0 %v1533
      %1933 = vmatpush2.bf16.msra.mxu0 %v1532
      %1934 = vmatprep.mubr.bf16.mxu0 %v1123
      %1935 = vmatmul.mubr.bf16.gmra.mxu0 %v1122
      %v1936 = vpop.f32.mrf.mxu0
      %v1937 = vadd.f32 0.0, %v1936
      %v1938 = vpop.f32.mrf.mxu0
      %v1939 = vadd.f32 0.0, %v1938
      %v1940 = vpop.f32.mrf.mxu0
      %v1941 = vpop.f32.mrf.mxu0
      %1942 = vdwg.mxu0
      %v1943 = vadd.f32 %v1900, %v1937
      %v1944 = vadd.f32 %v1901, %v1939
      %1945 = vmatprep.subr.bf16.mxu0 %v1295
      %1946 = vmatpush1.bf16.msra.mxu0 %v1294
      %1947 = vmatprep.subr.bf16.mxu0 %v1293
      %1948 = vmatpush1.bf16.msra.mxu0 %v1292
      %1949 = vmatprep.subr.bf16.mxu0 %v1291
      %1950 = vmatpush1.bf16.msra.mxu0 %v1290
      %1951 = vmatprep.subr.bf16.mxu0 %v1289
      %1952 = vmatpush1.bf16.msra.mxu0 %v1288
      %1953 = vmatprep.subr.bf16.mxu0 %v1287
      %1954 = vmatpush1.bf16.msra.mxu0 %v1286
      %1955 = vmatprep.subr.bf16.mxu0 %v1285
      %1956 = vmatpush1.bf16.msra.mxu0 %v1284
      %1957 = vmatprep.subr.bf16.mxu0 %v1283
      %1958 = vmatpush1.bf16.msra.mxu0 %v1282
      %1959 = vmatprep.subr.bf16.mxu0 %v1281
      %1960 = vmatpush1.bf16.msra.mxu0 %v1280
      %1961 = vmatprep.subr.bf16.mxu0 %v1311
      %1962 = vmatpush2.bf16.msra.mxu0 %v1310
      %1963 = vmatprep.subr.bf16.mxu0 %v1309
      %1964 = vmatpush2.bf16.msra.mxu0 %v1308
      %1965 = vmatprep.subr.bf16.mxu0 %v1307
      %1966 = vmatpush2.bf16.msra.mxu0 %v1306
      %1967 = vmatprep.subr.bf16.mxu0 %v1305
      %1968 = vmatpush2.bf16.msra.mxu0 %v1304
      %1969 = vmatprep.subr.bf16.mxu0 %v1303
      %1970 = vmatpush2.bf16.msra.mxu0 %v1302
      %1971 = vmatprep.subr.bf16.mxu0 %v1301
      %1972 = vmatpush2.bf16.msra.mxu0 %v1300
      %1973 = vmatprep.subr.bf16.mxu0 %v1299
      %1974 = vmatpush2.bf16.msra.mxu0 %v1298
      %1975 = vmatprep.subr.bf16.mxu0 %v1297
      %1976 = vmatpush2.bf16.msra.mxu0 %v1296
      %1977 = vmatprep.mubr.bf16.mxu0 %v1150
      %1978 = vmatmul.mubr.bf16.gmra.mxu0 %v1149
      %v1979 = vpop.f32.mrf.mxu0
      %v1980 = vadd.f32 0.0, %v1979
      %v1981 = vpop.f32.mrf.mxu0
      %v1982 = vadd.f32 0.0, %v1981
      %v1983 = vpop.f32.mrf.mxu0
      %v1984 = vpop.f32.mrf.mxu0
      %1985 = vdwg.mxu0
      %v1986 = vadd.f32 %v1943, %v1980
      %v1987 = vadd.f32 %v1944, %v1982
      %v1988 = vsub.f32 0.0, %v1986
      %v1989 = vsub.f32 0.0, %v1987
      %v1990 = vmul.f32 %v1988, 1.442695
      %v1991 = vpow.pop %v1990
      %v1992 = vmul.f32 %v1989, 1.442695
      %v1993 = vpow.pop %v1992
      %v1994 = vadd.f32 %v1991, 1.0
      %v1995 = vadd.f32 %v1993, 1.0
      %v1996 = vrcp.pop %v1994
      %v1997 = vmul.f32 1.0, %v1996
      %v1998 = vrcp.pop %v1995
      %v1999 = vmul.f32 1.0, %v1998
      %v2002 = vcombine.low %v1997, %v1999
      %v2004 = vunpack.c.l.s4 1966171168
      %v2005 = vunpack.c.0.s8 %v2004
      %v2006 = vlaneseq
      %v2007 = vshrl.u32 %v2006, 7
      %v2008 = vsub.s32 %v2005, %v2007
      %v2009 = vrot.slane %v2002, %v2008
      %v2010 = vcombine.high %v2009, %v2009
      %v2012 = vunpack.c.l.s4 1966171168
      %v2013 = vunpack.c.0.s8 %v2012
      %v2014 = vlaneseq
      %v2015 = vshrl.u32 %v2014, 7
      %v2016 = vsub.s32 %v2013, %v2015
      %v2017 = vrot.slane %v2009, %v2016
      %v2019 = vunpack.c.l.s4 1966171168
      %v2020 = vunpack.c.0.s8 %v2019
      %v2021 = vlaneseq
      %v2022 = vshrl.u32 %v2021, 7
      %v2023 = vsub.s32 %v2020, %v2022
      %v2024 = vrot.slane %v2010, %v2023
      %v2027 = vlaneseq
      %vm2028 = vcmp.ge.s32.totalorder %v2027, 0
      %vm2029 = vcmp.lt.s32.totalorder %v2027, 256
      %vm2030 = vmand %vm2028, %vm2029
      %2031 = vst.msk [vmem:[#allocation9] sm:$0x3] %vm2030, %v2017
      %2032 = vst.msk [vmem:[#allocation9 + $0x2] sm:$0x3] %vm2030, %v2024
    $region25: #{tpu_custom_call.1} parent=1 // pred_fallthru
      _
    // Predicated region
    $region26: #{tpu_custom_call.1} parent=1 // pred_check
      _
    $region27: #{tpu_custom_call.1} parent=1 // pred_check_branch
      %2034 = sbr.rel (0) target = $region29
    $region28: #{tpu_custom_call.1} parent=1 // pred_region
      %s2036 = ssub.s32 64, 64
      %2037 = vsyncadd [#allocation6], %s2036
      %s2038 = sshll.u32 [#allocation9], 4
      %s2039 = int_to_ptr.vmem [resolvable:$true] %s2038
      %2044 = dma.vmem_to_hbm [thread:$0]  %s2039, 64, %s2, [#allocation6], 32, 32, 2
    $region29: #{tpu_custom_call.1} parent=1 // pred_fallthru
      _
    // Predicated region
    $region30: #{tpu_custom_call.1} parent=1 // pred_check
      _
    $region31: #{tpu_custom_call.1} parent=1 // pred_check_branch
      %2046 = sbr.rel (0) target = $region33
    $region32: #{tpu_custom_call.1} parent=1 // pred_region
      %2047 = dma.done [#allocation6], 64
    $region33: #{tpu_custom_call.1} parent=1 // pred_fallthru
      _
    %2048 = vsyncpa [#allocation5], 1
    %2049 = vsyncpa [#allocation8], 1
    %2050 = vsyncpa [#allocation6], 1

</llo_original>
